<compile_context>
chip_gen: v6e
topology: v6e:2x2x1
jax: 0.10.0
libtpu: 0.0.40
codegen_flags: <defaults>
</compile_context>

<pallas_src>
import jax
import jax.numpy as jnp
from jax.experimental import pallas as pl
from jax.experimental.pallas import tpu as pltpu

# ---------------- synthetic "roberta-tiny" config ----------------
VOCAB = 100
HIDDEN = 64                 # real model width
H_PAD = 128                 # lane-dense padded width used inside the kernel
N_HEADS = 4
HEAD_DIM = HIDDEN // N_HEADS
INTERMEDIATE = 128          # == H_PAD (keeps the packed bias row lane-dense)
N_LAYERS = 2
MAX_POS = 40
PAD_ID = 1                  # RoBERTa's padding_idx
LN_EPS = 1e-5

assert HIDDEN % N_HEADS == 0
assert INTERMEDIATE == H_PAD

# rows of the packed per-layer parameter block [L, 10, H_PAD]
ROW_BQ, ROW_BK, ROW_BV, ROW_BO, ROW_BI, ROW_BO2 = 0, 1, 2, 3, 4, 5
ROW_LN1_G, ROW_LN1_B, ROW_LN2_G, ROW_LN2_B = 6, 7, 8, 9
NUM_LPARAM_ROWS = 10


def _layernorm(x, gamma, beta):
    # x is [T, H_PAD] with lanes >= HIDDEN exactly zero; statistics over the real HIDDEN
    # features (padded lanes contribute 0 to both sums). gamma/beta are zero on padded
    # lanes, so the padded lanes stay exactly zero after normalization.
    s = jnp.sum(x, axis=-1, keepdims=True)
    mean = s * (1.0 / HIDDEN)
    var = jnp.sum(x * x, axis=-1, keepdims=True) * (1.0 / HIDDEN) - mean * mean
    inv = jax.lax.rsqrt(var + LN_EPS)
    return (x - mean) * inv * gamma + beta


def _gelu(x):
    # TODO(synk): HF RoBERTa uses erf-based GELU; tanh approximation used here.
    c = jnp.sqrt(2.0 / jnp.pi).astype(x.dtype)
    return 0.5 * x * (1.0 + jnp.tanh(c * (x + 0.044715 * x * x * x)))


# ---------------- fused Pallas kernel: whole batch per step, grid over layers ----------
def fused_encoder_kernel(emb_ref, mask_ref, eln_ref,
                         wqkv_ref, wo_ref, wi_ref, wo2_ref, lp_ref,
                         out_ref):
    layer = pl.program_id(0)

    # Layer 0: embedding LayerNorm written into the VMEM-resident output block
    # (same block index every layer => out_ref doubles as the resident activation).
    @pl.when(layer == 0)
    def _():
        eln = eln_ref[...]                                   # [2, H_PAD]: gamma, beta
        out_ref[...] = _layernorm(emb_ref[...], eln[0:1, :], eln[1:2, :])

    lp = lp_ref[...]                                         # [10, H_PAD] packed params
    b_q, b_k, b_v = lp[ROW_BQ:ROW_BQ + 1], lp[ROW_BK:ROW_BK + 1], lp[ROW_BV:ROW_BV + 1]
    b_o, b_i, b_o2 = lp[ROW_BO:ROW_BO + 1], lp[ROW_BI:ROW_BI + 1], lp[ROW_BO2:ROW_BO2 + 1]
    ln1_g, ln1_b = lp[ROW_LN1_G:ROW_LN1_G + 1], lp[ROW_LN1_B:ROW_LN1_B + 1]
    ln2_g, ln2_b = lp[ROW_LN2_G:ROW_LN2_G + 1], lp[ROW_LN2_B:ROW_LN2_B + 1]

    x = out_ref[...]                                         # [T, H_PAD] f32, resident
    x_bf = x.astype(jnp.bfloat16)

    # ---- fused QKV projection on the whole (batch*seq) token block ----
    qkv = jnp.dot(x_bf, wqkv_ref[...],
                  preferred_element_type=jnp.float32)        # [T, 3*H_PAD] f32
    q = qkv[:, 0:H_PAD] + b_q                                # 128-lane aligned slices
    k = qkv[:, H_PAD:2 * H_PAD] + b_k
    v = qkv[:, 2 * H_PAD:3 * H_PAD] + b_v
    k_bf = k.astype(jnp.bfloat16)

    mask_tt = mask_ref[...]                                  # [T, T] additive mask
    lane = jax.lax.broadcasted_iota(jnp.int32, (1, H_PAD), 1)
    scale = 1.0 / (HEAD_DIM ** 0.5)

    # ---- per-head attention with full-width lane masks (no lane-shuffle split/merge):
    # masking q selects the head's contraction lanes; masking v routes the context back
    # into the head's own lanes, so ctx accumulates directly in [T, H_PAD] layout.
    ctx = jnp.zeros_like(x)
    for h in range(N_HEADS):                                 # static unroll (4)
        in_head = (lane >= h * HEAD_DIM) & (lane < (h + 1) * HEAD_DIM)
        qh = (q * jnp.where(in_head, scale, 0.0)).astype(jnp.bfloat16)
        s = jax.lax.dot_general(qh, k_bf, (((1,), (1,)), ((), ())),
                                preferred_element_type=jnp.float32)   # [T, T]
        s = s + mask_tt
        s = s - jnp.max(s, axis=-1, keepdims=True)
        p = jnp.exp(s)
        p = p * pl.reciprocal(jnp.sum(p, axis=-1, keepdims=True), approx=True)
        vh = (v * jnp.where(in_head, 1.0, 0.0)).astype(jnp.bfloat16)
        ctx = ctx + jnp.dot(p.astype(jnp.bfloat16), vh,
                            preferred_element_type=jnp.float32)       # [T, H_PAD]

    # ---- attention output projection + residual LayerNorm ----
    attn_out = jnp.dot(ctx.astype(jnp.bfloat16), wo_ref[...],
                       preferred_element_type=jnp.float32) + b_o
    x1 = _layernorm(x + attn_out, ln1_g, ln1_b)

    # ---- FFN ----
    hid = jnp.dot(x1.astype(jnp.bfloat16), wi_ref[...],
                  preferred_element_type=jnp.float32) + b_i           # [T, INTERMEDIATE]
    hid = _gelu(hid)
    ffn = jnp.dot(hid.astype(jnp.bfloat16), wo2_ref[...],
                  preferred_element_type=jnp.float32) + b_o2
    x2 = _layernorm(x1 + ffn, ln2_g, ln2_b)

    out_ref[...] = x2                                        # resident; HBM writeback once


# ---------------- wrapper: one pallas_call for the whole encoder ----------------
def roberta_forward_fused(emb_flat_pad, mask_tt, params):
    T, _ = emb_flat_pad.shape
    fixed2 = lambda l: (0, 0)
    layer3 = lambda l: (l, 0, 0)

    in_specs = [
        pl.BlockSpec((T, H_PAD), fixed2),                         # embeddings (lane-dense)
        pl.BlockSpec((T, T), fixed2),                             # [token, token] additive mask
        pl.BlockSpec((2, H_PAD), fixed2),                         # emb LN gamma/beta
        pl.BlockSpec((None, H_PAD, 3 * H_PAD), layer3),           # wqkv  (bf16)
        pl.BlockSpec((None, H_PAD, H_PAD), layer3),               # wo    (bf16)
        pl.BlockSpec((None, H_PAD, INTERMEDIATE), layer3),        # wi    (bf16)
        pl.BlockSpec((None, INTERMEDIATE, H_PAD), layer3),        # wo2   (bf16)
        pl.BlockSpec((None, NUM_LPARAM_ROWS, H_PAD), layer3),     # packed biases + LN params
    ]

    return pl.pallas_call(
        fused_encoder_kernel,
        grid=(N_LAYERS,),
        in_specs=in_specs,
        out_specs=pl.BlockSpec((T, H_PAD), fixed2),
        out_shape=jax.ShapeDtypeStruct((T, H_PAD), jnp.float32),
        compiler_params=pltpu.CompilerParams(
            dimension_semantics=("arbitrary",)),
    )(emb_flat_pad, mask_tt, params['emb_ln'],
      params['wqkv'], params['wo'], params['wi'], params['wo2'],
      params['lparams'])


# ---------------- parameter init (deterministic, synthetic, padded + packed) ----------
def init_params(key):
    def dense(k, shape):
        return (0.02 * jax.random.normal(k, shape)).astype(jnp.float32)

    keys = jax.random.split(key, 3 + N_LAYERS)
    params = {
        'word_emb': dense(keys[0], (VOCAB, HIDDEN)),
        'pos_emb': dense(keys[1], (MAX_POS, HIDDEN)),
        'type_emb': dense(keys[2], (1, HIDDEN)),
    }
    # embedding LayerNorm params packed [2, H_PAD]; padded lanes stay zero.
    eln = jnp.zeros((2, H_PAD), jnp.float32).at[0, :HIDDEN].set(1.0)
    params['emb_ln'] = eln

    def pad_hh(w):      # [HIDDEN, HIDDEN] -> [H_PAD, H_PAD], zero-padded
        return jnp.zeros((H_PAD, H_PAD), jnp.float32).at[:HIDDEN, :HIDDEN].set(w)

    wqkv_l, wo_l, wi_l, wo2_l, lp_l = [], [], [], [], []
    for l in range(N_LAYERS):
        lk = jax.random.split(keys[3 + l], 6)
        wq = dense(lk[0], (HIDDEN, HIDDEN))
        wk = dense(lk[1], (HIDDEN, HIDDEN))
        wv = dense(lk[2], (HIDDEN, HIDDEN))
        wo = dense(lk[3], (HIDDEN, HIDDEN))
        wi = dense(lk[4], (HIDDEN, INTERMEDIATE))
        wo2 = dense(lk[5], (INTERMEDIATE, HIDDEN))

        wqkv_l.append(jnp.concatenate([pad_hh(wq), pad_hh(wk), pad_hh(wv)], axis=1))
        wo_l.append(pad_hh(wo))
        wi_l.append(jnp.zeros((H_PAD, INTERMEDIATE), jnp.float32).at[:HIDDEN, :].set(wi))
        wo2_l.append(jnp.zeros((INTERMEDIATE, H_PAD), jnp.float32).at[:, :HIDDEN].set(wo2))

        # packed small per-layer params: q/k/v/o/i/o2 biases (zeros here) + LN gamma/beta.
        lp = jnp.zeros((NUM_LPARAM_ROWS, H_PAD), jnp.float32)
        lp = lp.at[ROW_LN1_G, :HIDDEN].set(1.0)
        lp = lp.at[ROW_LN2_G, :HIDDEN].set(1.0)
        lp_l.append(lp)

    # Matmul weights in bf16 (f32 accumulation in-kernel); biases / LN params stay f32.
    params['wqkv'] = jnp.stack(wqkv_l).astype(jnp.bfloat16)   # [L, H_PAD, 3*H_PAD]
    params['wo'] = jnp.stack(wo_l).astype(jnp.bfloat16)       # [L, H_PAD, H_PAD]
    params['wi'] = jnp.stack(wi_l).astype(jnp.bfloat16)       # [L, H_PAD, I]
    params['wo2'] = jnp.stack(wo2_l).astype(jnp.bfloat16)     # [L, I, H_PAD]
    params['lparams'] = jnp.stack(lp_l)                       # [L, 10, H_PAD] f32
    return params


# ---------------- forward (mirrors RobertaEncoder.forward) ----------------
@jax.jit
def _forward_jit(token_ids, attn_mask, params):
    B, S = token_ids.shape
    mask_i = attn_mask.astype(jnp.int32)
    # RoBERTa position ids: cumsum of mask (1-based) + padding_idx, pads -> padding_idx.
    pos_ids = jnp.cumsum(mask_i, axis=1) * mask_i + PAD_ID

    emb = (params['word_emb'][token_ids]
           + params['pos_emb'][pos_ids]
           + params['type_emb'][0][None, None, :])                     # [B, S, HIDDEN]

    # lane-dense padded + token-flattened activation presented to the kernel
    emb = jnp.pad(emb, ((0, 0), (0, 0), (0, H_PAD - HIDDEN)))
    emb_flat = emb.reshape(B * S, H_PAD)

    # combined additive attention mask over flattened tokens:
    # -1e9 where the key is a pad token OR belongs to a different batch element.
    valid = attn_mask.reshape(-1).astype(jnp.float32)                  # [T]
    batch_id = jnp.repeat(jnp.arange(B), S)                            # [T]
    same_batch = (batch_id[:, None] == batch_id[None, :]).astype(jnp.float32)
    key_ok = same_batch * valid[None, :]
    mask_tt = (1.0 - key_ok) * (-1e9)                                  # [T, T]

    out = roberta_forward_fused(emb_flat, mask_tt, params)             # [T, H_PAD]
    return out[:, :HIDDEN].reshape(B, S, HIDDEN)


def roberta_encoder_forward(token_ids, attn_mask, input_lengths, params):
    # TODO(synk): RobertaTokenizer (robertify_input) has no Pallas equivalent;
    # token_ids / attn_mask / input_lengths are provided directly.
    cont_reps = _forward_jit(token_ids, attn_mask, params)   # last hidden states [B, S, H]
    return cont_reps, input_lengths


if __name__ == "__main__":
    key = jax.random.PRNGKey(0)
    params = init_params(key)

    # Synthetic "tokenized" batch: batch=2, seq=8 (<s>=0, </s>=2, <pad>=1).
    token_ids = jnp.array([[0, 10, 23, 7, 45, 2, 1, 1],
                           [0, 5, 67, 33, 9, 12, 88, 2]], dtype=jnp.int32)
    attn_mask = (token_ids != PAD_ID).astype(jnp.int32)
    input_lengths = [6, 8]

    cont_reps, lengths = roberta_encoder_forward(
        token_ids, attn_mask, input_lengths, params)
    cont_reps = jax.block_until_ready(cont_reps)

    assert cont_reps.shape == (2, 8, HIDDEN)
    assert cont_reps.dtype == jnp.float32
    assert bool(jnp.all(jnp.isfinite(cont_reps)))
    print("KERNEL_OK")
</pallas_src>

<mosaic_0001>
module attributes {stable_mosaic.version = 11 : i64} {
  func.func @fused_encoder_kernel(%arg0: i32, %arg1: memref<16x128xf32, #tpu.memory_space<vmem>>, %arg2: memref<16x16xf32, #tpu.memory_space<vmem>>, %arg3: memref<2x128xf32, #tpu.memory_space<vmem>>, %arg4: memref<1x128x384xbf16, #tpu.memory_space<vmem>>, %arg5: memref<1x128x128xbf16, #tpu.memory_space<vmem>>, %arg6: memref<1x128x128xbf16, #tpu.memory_space<vmem>>, %arg7: memref<1x128x128xbf16, #tpu.memory_space<vmem>>, %arg8: memref<1x10x128xf32, #tpu.memory_space<vmem>>, %arg9: memref<16x128xf32, #tpu.memory_space<vmem>>) attributes {dimension_semantics = [#tpu.dimension_semantics<arbitrary>], iteration_bounds = array<i64: 2>, scalar_prefetch = 0 : i64, scratch_operands = 0 : i64, tpu.core_type = #tpu.core_type<tc>, window_params = [{pipeline_mode = #tpu.pipeline_mode<synchronous>, transform_indices = @transform_0, window_bounds = array<i64: 16, 128>}, {pipeline_mode = #tpu.pipeline_mode<synchronous>, transform_indices = @transform_1, window_bounds = array<i64: 16, 16>}, {pipeline_mode = #tpu.pipeline_mode<synchronous>, transform_indices = @transform_2, window_bounds = array<i64: 2, 128>}, {transform_indices = @transform_3, window_bounds = array<i64: 1, 128, 384>}, {transform_indices = @transform_4, window_bounds = array<i64: 1, 128, 128>}, {transform_indices = @transform_5, window_bounds = array<i64: 1, 128, 128>}, {transform_indices = @transform_6, window_bounds = array<i64: 1, 128, 128>}, {transform_indices = @transform_7, window_bounds = array<i64: 1, 10, 128>}, {pipeline_mode = #tpu.pipeline_mode<synchronous>, transform_indices = @transform_8, window_bounds = array<i64: 16, 128>}]} {
    %c0_i32 = arith.constant 0 : i32
    %0 = arith.cmpi eq, %arg0, %c0_i32 : i32
    %1 = arith.extui %0 : i1 to i32
    %c0_i32_0 = arith.constant 0 : i32
    %2 = arith.cmpi ne, %1, %c0_i32_0 : i32
    scf.if %2 {
      %c0_75 = arith.constant 0 : index
      %c0_76 = arith.constant 0 : index
      %240 = vector.load %arg3[%c0_75, %c0_76] : memref<2x128xf32, #tpu.memory_space<vmem>>, vector<2x128xf32>
      %c0_77 = arith.constant 0 : index
      %c0_78 = arith.constant 0 : index
      %241 = vector.load %arg1[%c0_77, %c0_78] : memref<16x128xf32, #tpu.memory_space<vmem>>, vector<16x128xf32>
      %242 = vector.extract_strided_slice %240 {offsets = [0, 0], sizes = [1, 128], strides = [1, 1]} : vector<2x128xf32> to vector<1x128xf32>
      %243 = vector.extract_strided_slice %240 {offsets = [1, 0], sizes = [1, 128], strides = [1, 1]} : vector<2x128xf32> to vector<1x128xf32>
      %cst_79 = arith.constant dense<0.000000e+00> : vector<16xf32>
      %244 = vector.multi_reduction <add>, %241, %cst_79 [1] : vector<16x128xf32> to vector<16xf32>
      %245 = vector.shape_cast %244 : vector<16xf32> to vector<16x1xf32>
      %cst_80 = arith.constant 1.562500e-02 : f32
      %246 = vector.broadcast %cst_80 : f32 to vector<16x1xf32>
      %247 = arith.mulf %245, %246 : vector<16x1xf32>
      %248 = arith.mulf %241, %241 : vector<16x128xf32>
      %cst_81 = arith.constant dense<0.000000e+00> : vector<16xf32>
      %249 = vector.multi_reduction <add>, %248, %cst_81 [1] : vector<16x128xf32> to vector<16xf32>
      %250 = vector.shape_cast %249 : vector<16xf32> to vector<16x1xf32>
      %cst_82 = arith.constant 1.562500e-02 : f32
      %251 = vector.broadcast %cst_82 : f32 to vector<16x1xf32>
      %252 = arith.mulf %250, %251 : vector<16x1xf32>
      %253 = arith.mulf %247, %247 : vector<16x1xf32>
      %254 = arith.subf %252, %253 : vector<16x1xf32>
      %cst_83 = arith.constant 9.99999974E-6 : f32
      %255 = vector.broadcast %cst_83 : f32 to vector<16x1xf32>
      %256 = arith.addf %254, %255 : vector<16x1xf32>
      %257 = math.rsqrt %256 : vector<16x1xf32>
      %258 = vector.broadcast %247 : vector<16x1xf32> to vector<16x128xf32>
      %259 = arith.subf %241, %258 : vector<16x128xf32>
      %260 = vector.broadcast %257 : vector<16x1xf32> to vector<16x128xf32>
      %261 = arith.mulf %259, %260 : vector<16x128xf32>
      %262 = vector.broadcast %242 : vector<1x128xf32> to vector<16x128xf32>
      %263 = arith.mulf %261, %262 : vector<16x128xf32>
      %264 = vector.broadcast %243 : vector<1x128xf32> to vector<16x128xf32>
      %265 = arith.addf %263, %264 : vector<16x128xf32>
      %c0_84 = arith.constant 0 : index
      %c0_85 = arith.constant 0 : index
      %266 = vector.load %arg9[%c0_84, %c0_85] : memref<16x128xf32, #tpu.memory_space<vmem>>, vector<16x128xf32>
      tpu.vector_store %arg9[%c0_84, %c0_85], %265 {strides = array<i32>} : memref<16x128xf32, #tpu.memory_space<vmem>>, vector<16x128xf32>,
    } else {
    }
    %c0 = arith.constant 0 : index
    %c0_1 = arith.constant 0 : index
    %c0_2 = arith.constant 0 : index
    %3 = vector.load %arg8[%c0, %c0_1, %c0_2] : memref<1x10x128xf32, #tpu.memory_space<vmem>>, vector<1x10x128xf32>
    %4 = vector.shape_cast %3 : vector<1x10x128xf32> to vector<10x128xf32>
    %5 = vector.extract_strided_slice %4 {offsets = [0, 0], sizes = [1, 128], strides = [1, 1]} : vector<10x128xf32> to vector<1x128xf32>
    %6 = vector.extract_strided_slice %4 {offsets = [1, 0], sizes = [1, 128], strides = [1, 1]} : vector<10x128xf32> to vector<1x128xf32>
    %7 = vector.extract_strided_slice %4 {offsets = [2, 0], sizes = [1, 128], strides = [1, 1]} : vector<10x128xf32> to vector<1x128xf32>
    %8 = vector.extract_strided_slice %4 {offsets = [3, 0], sizes = [1, 128], strides = [1, 1]} : vector<10x128xf32> to vector<1x128xf32>
    %9 = vector.extract_strided_slice %4 {offsets = [4, 0], sizes = [1, 128], strides = [1, 1]} : vector<10x128xf32> to vector<1x128xf32>
    %10 = vector.extract_strided_slice %4 {offsets = [5, 0], sizes = [1, 128], strides = [1, 1]} : vector<10x128xf32> to vector<1x128xf32>
    %11 = vector.extract_strided_slice %4 {offsets = [6, 0], sizes = [1, 128], strides = [1, 1]} : vector<10x128xf32> to vector<1x128xf32>
    %12 = vector.extract_strided_slice %4 {offsets = [7, 0], sizes = [1, 128], strides = [1, 1]} : vector<10x128xf32> to vector<1x128xf32>
    %13 = vector.extract_strided_slice %4 {offsets = [8, 0], sizes = [1, 128], strides = [1, 1]} : vector<10x128xf32> to vector<1x128xf32>
    %14 = vector.extract_strided_slice %4 {offsets = [9, 0], sizes = [1, 128], strides = [1, 1]} : vector<10x128xf32> to vector<1x128xf32>
    %c0_3 = arith.constant 0 : index
    %c0_4 = arith.constant 0 : index
    %15 = vector.load %arg9[%c0_3, %c0_4] : memref<16x128xf32, #tpu.memory_space<vmem>>, vector<16x128xf32>
    %16 = arith.truncf %15 : vector<16x128xf32> to vector<16x128xbf16>
    %c0_5 = arith.constant 0 : index
    %c0_6 = arith.constant 0 : index
    %c0_7 = arith.constant 0 : index
    %17 = vector.load %arg4[%c0_5, %c0_6, %c0_7] : memref<1x128x384xbf16, #tpu.memory_space<vmem>>, vector<1x128x384xbf16>
    %18 = vector.shape_cast %17 : vector<1x128x384xbf16> to vector<128x384xbf16>
    %cst = arith.constant dense<0.000000e+00> : vector<16x384xf32>
    %19 = tpu.matmul %16, %18, %cst {dimension_numbers = #tpu.dot_dimension_numbers<[1], [0], [0], [1], [0, 0, 1, 1], [], []>} : vector<16x128xbf16>, vector<128x384xbf16>, vector<16x384xf32> -> vector<16x384xf32>
    %20 = vector.extract_strided_slice %19 {offsets = [0, 0], sizes = [16, 128], strides = [1, 1]} : vector<16x384xf32> to vector<16x128xf32>
    %21 = vector.broadcast %5 : vector<1x128xf32> to vector<16x128xf32>
    %22 = arith.addf %20, %21 : vector<16x128xf32>
    %23 = vector.extract_strided_slice %19 {offsets = [0, 128], sizes = [16, 128], strides = [1, 1]} : vector<16x384xf32> to vector<16x128xf32>
    %24 = vector.broadcast %6 : vector<1x128xf32> to vector<16x128xf32>
    %25 = arith.addf %23, %24 : vector<16x128xf32>
    %26 = vector.extract_strided_slice %19 {offsets = [0, 256], sizes = [16, 128], strides = [1, 1]} : vector<16x384xf32> to vector<16x128xf32>
    %27 = vector.broadcast %7 : vector<1x128xf32> to vector<16x128xf32>
    %28 = arith.addf %26, %27 : vector<16x128xf32>
    %29 = arith.truncf %25 : vector<16x128xf32> to vector<16x128xbf16>
    %c0_8 = arith.constant 0 : index
    %c0_9 = arith.constant 0 : index
    %30 = vector.load %arg2[%c0_8, %c0_9] : memref<16x16xf32, #tpu.memory_space<vmem>>, vector<16x16xf32>
    %31 = tpu.iota {dimensions = array<i32: 1>} : vector<1x128xi32>
    %cst_10 = arith.constant 0.000000e+00 : f32
    %32 = vector.broadcast %cst_10 : f32 to vector<16x128xf32>
    %c0_i32_11 = arith.constant 0 : i32
    %33 = vector.broadcast %c0_i32_11 : i32 to vector<1x128xi32>
    %34 = arith.cmpi sge, %31, %33 : vector<1x128xi32>
    %c16_i32 = arith.constant 16 : i32
    %35 = vector.broadcast %c16_i32 : i32 to vector<1x128xi32>
    %36 = arith.cmpi slt, %31, %35 : vector<1x128xi32>
    %37 = arith.andi %34, %36 : vector<1x128xi1>
    %cst_12 = arith.constant 2.500000e-01 : f32
    %cst_13 = arith.constant 0.000000e+00 : f32
    %38 = vector.broadcast %cst_12 : f32 to vector<1x128xf32>
    %39 = vector.broadcast %cst_13 : f32 to vector<1x128xf32>
    %40 = arith.select %37, %38, %39 : vector<1x128xi1>, vector<1x128xf32>
    %41 = vector.broadcast %40 : vector<1x128xf32> to vector<16x128xf32>
    %42 = arith.mulf %22, %41 : vector<16x128xf32>
    %43 = arith.truncf %42 : vector<16x128xf32> to vector<16x128xbf16>
    %cst_14 = arith.constant dense<0.000000e+00> : vector<16x16xf32>
    %44 = tpu.matmul %43, %29, %cst_14 {dimension_numbers = #tpu.dot_dimension_numbers<[1], [1], [0], [0], [0, 0, 1, 0], [], []>} : vector<16x128xbf16>, vector<16x128xbf16>, vector<16x16xf32> -> vector<16x16xf32>
    %45 = arith.addf %44, %30 : vector<16x16xf32>
    %cst_15 = arith.constant dense<0xFF800000> : vector<16xf32>
    %46 = vector.multi_reduction <maximumf>, %45, %cst_15 [1] : vector<16x16xf32> to vector<16xf32>
    %47 = vector.shape_cast %46 : vector<16xf32> to vector<16x1xf32>
    %48 = vector.broadcast %47 : vector<16x1xf32> to vector<16x16xf32>
    %49 = arith.subf %45, %48 : vector<16x16xf32>
    %50 = math.exp %49 : vector<16x16xf32>
    %cst_16 = arith.constant dense<0.000000e+00> : vector<16xf32>
    %51 = vector.multi_reduction <add>, %50, %cst_16 [1] : vector<16x16xf32> to vector<16xf32>
    %52 = vector.shape_cast %51 : vector<16xf32> to vector<16x1xf32>
    %53 = tpu.reciprocal %52 {approx = true} : vector<16x1xf32> -> vector<16x1xf32>
    %54 = vector.broadcast %53 : vector<16x1xf32> to vector<16x16xf32>
    %55 = arith.mulf %50, %54 : vector<16x16xf32>
    %cst_17 = arith.constant 1.000000e+00 : f32
    %cst_18 = arith.constant 0.000000e+00 : f32
    %56 = vector.broadcast %cst_17 : f32 to vector<1x128xf32>
    %57 = vector.broadcast %cst_18 : f32 to vector<1x128xf32>
    %58 = arith.select %37, %56, %57 : vector<1x128xi1>, vector<1x128xf32>
    %59 = vector.broadcast %58 : vector<1x128xf32> to vector<16x128xf32>
    %60 = arith.mulf %28, %59 : vector<16x128xf32>
    %61 = arith.truncf %60 : vector<16x128xf32> to vector<16x128xbf16>
    %62 = arith.truncf %55 : vector<16x16xf32> to vector<16x16xbf16>
    %cst_19 = arith.constant dense<0.000000e+00> : vector<16x128xf32>
    %63 = tpu.matmul %62, %61, %cst_19 {dimension_numbers = #tpu.dot_dimension_numbers<[1], [0], [0], [1], [0, 0, 1, 1], [], []>} : vector<16x16xbf16>, vector<16x128xbf16>, vector<16x128xf32> -> vector<16x128xf32>
    %64 = arith.addf %32, %63 : vector<16x128xf32>
    %c16_i32_20 = arith.constant 16 : i32
    %65 = vector.broadcast %c16_i32_20 : i32 to vector<1x128xi32>
    %66 = arith.cmpi sge, %31, %65 : vector<1x128xi32>
    %c32_i32 = arith.constant 32 : i32
    %67 = vector.broadcast %c32_i32 : i32 to vector<1x128xi32>
    %68 = arith.cmpi slt, %31, %67 : vector<1x128xi32>
    %69 = arith.andi %66, %68 : vector<1x128xi1>
    %cst_21 = arith.constant 2.500000e-01 : f32
    %cst_22 = arith.constant 0.000000e+00 : f32
    %70 = vector.broadcast %cst_21 : f32 to vector<1x128xf32>
    %71 = vector.broadcast %cst_22 : f32 to vector<1x128xf32>
    %72 = arith.select %69, %70, %71 : vector<1x128xi1>, vector<1x128xf32>
    %73 = vector.broadcast %72 : vector<1x128xf32> to vector<16x128xf32>
    %74 = arith.mulf %22, %73 : vector<16x128xf32>
    %75 = arith.truncf %74 : vector<16x128xf32> to vector<16x128xbf16>
    %cst_23 = arith.constant dense<0.000000e+00> : vector<16x16xf32>
    %76 = tpu.matmul %75, %29, %cst_23 {dimension_numbers = #tpu.dot_dimension_numbers<[1], [1], [0], [0], [0, 0, 1, 0], [], []>} : vector<16x128xbf16>, vector<16x128xbf16>, vector<16x16xf32> -> vector<16x16xf32>
    %77 = arith.addf %76, %30 : vector<16x16xf32>
    %cst_24 = arith.constant dense<0xFF800000> : vector<16xf32>
    %78 = vector.multi_reduction <maximumf>, %77, %cst_24 [1] : vector<16x16xf32> to vector<16xf32>
    %79 = vector.shape_cast %78 : vector<16xf32> to vector<16x1xf32>
    %80 = vector.broadcast %79 : vector<16x1xf32> to vector<16x16xf32>
    %81 = arith.subf %77, %80 : vector<16x16xf32>
    %82 = math.exp %81 : vector<16x16xf32>
    %cst_25 = arith.constant dense<0.000000e+00> : vector<16xf32>
    %83 = vector.multi_reduction <add>, %82, %cst_25 [1] : vector<16x16xf32> to vector<16xf32>
    %84 = vector.shape_cast %83 : vector<16xf32> to vector<16x1xf32>
    %85 = tpu.reciprocal %84 {approx = true} : vector<16x1xf32> -> vector<16x1xf32>
    %86 = vector.broadcast %85 : vector<16x1xf32> to vector<16x16xf32>
    %87 = arith.mulf %82, %86 : vector<16x16xf32>
    %cst_26 = arith.constant 1.000000e+00 : f32
    %cst_27 = arith.constant 0.000000e+00 : f32
    %88 = vector.broadcast %cst_26 : f32 to vector<1x128xf32>
    %89 = vector.broadcast %cst_27 : f32 to vector<1x128xf32>
    %90 = arith.select %69, %88, %89 : vector<1x128xi1>, vector<1x128xf32>
    %91 = vector.broadcast %90 : vector<1x128xf32> to vector<16x128xf32>
    %92 = arith.mulf %28, %91 : vector<16x128xf32>
    %93 = arith.truncf %92 : vector<16x128xf32> to vector<16x128xbf16>
    %94 = arith.truncf %87 : vector<16x16xf32> to vector<16x16xbf16>
    %cst_28 = arith.constant dense<0.000000e+00> : vector<16x128xf32>
    %95 = tpu.matmul %94, %93, %cst_28 {dimension_numbers = #tpu.dot_dimension_numbers<[1], [0], [0], [1], [0, 0, 1, 1], [], []>} : vector<16x16xbf16>, vector<16x128xbf16>, vector<16x128xf32> -> vector<16x128xf32>
    %96 = arith.addf %64, %95 : vector<16x128xf32>
    %c32_i32_29 = arith.constant 32 : i32
    %97 = vector.broadcast %c32_i32_29 : i32 to vector<1x128xi32>
    %98 = arith.cmpi sge, %31, %97 : vector<1x128xi32>
    %c48_i32 = arith.constant 48 : i32
    %99 = vector.broadcast %c48_i32 : i32 to vector<1x128xi32>
    %100 = arith.cmpi slt, %31, %99 : vector<1x128xi32>
    %101 = arith.andi %98, %100 : vector<1x128xi1>
    %cst_30 = arith.constant 2.500000e-01 : f32
    %cst_31 = arith.constant 0.000000e+00 : f32
    %102 = vector.broadcast %cst_30 : f32 to vector<1x128xf32>
    %103 = vector.broadcast %cst_31 : f32 to vector<1x128xf32>
    %104 = arith.select %101, %102, %103 : vector<1x128xi1>, vector<1x128xf32>
    %105 = vector.broadcast %104 : vector<1x128xf32> to vector<16x128xf32>
    %106 = arith.mulf %22, %105 : vector<16x128xf32>
    %107 = arith.truncf %106 : vector<16x128xf32> to vector<16x128xbf16>
    %cst_32 = arith.constant dense<0.000000e+00> : vector<16x16xf32>
    %108 = tpu.matmul %107, %29, %cst_32 {dimension_numbers = #tpu.dot_dimension_numbers<[1], [1], [0], [0], [0, 0, 1, 0], [], []>} : vector<16x128xbf16>, vector<16x128xbf16>, vector<16x16xf32> -> vector<16x16xf32>
    %109 = arith.addf %108, %30 : vector<16x16xf32>
    %cst_33 = arith.constant dense<0xFF800000> : vector<16xf32>
    %110 = vector.multi_reduction <maximumf>, %109, %cst_33 [1] : vector<16x16xf32> to vector<16xf32>
    %111 = vector.shape_cast %110 : vector<16xf32> to vector<16x1xf32>
    %112 = vector.broadcast %111 : vector<16x1xf32> to vector<16x16xf32>
    %113 = arith.subf %109, %112 : vector<16x16xf32>
    %114 = math.exp %113 : vector<16x16xf32>
    %cst_34 = arith.constant dense<0.000000e+00> : vector<16xf32>
    %115 = vector.multi_reduction <add>, %114, %cst_34 [1] : vector<16x16xf32> to vector<16xf32>
    %116 = vector.shape_cast %115 : vector<16xf32> to vector<16x1xf32>
    %117 = tpu.reciprocal %116 {approx = true} : vector<16x1xf32> -> vector<16x1xf32>
    %118 = vector.broadcast %117 : vector<16x1xf32> to vector<16x16xf32>
    %119 = arith.mulf %114, %118 : vector<16x16xf32>
    %cst_35 = arith.constant 1.000000e+00 : f32
    %cst_36 = arith.constant 0.000000e+00 : f32
    %120 = vector.broadcast %cst_35 : f32 to vector<1x128xf32>
    %121 = vector.broadcast %cst_36 : f32 to vector<1x128xf32>
    %122 = arith.select %101, %120, %121 : vector<1x128xi1>, vector<1x128xf32>
    %123 = vector.broadcast %122 : vector<1x128xf32> to vector<16x128xf32>
    %124 = arith.mulf %28, %123 : vector<16x128xf32>
    %125 = arith.truncf %124 : vector<16x128xf32> to vector<16x128xbf16>
    %126 = arith.truncf %119 : vector<16x16xf32> to vector<16x16xbf16>
    %cst_37 = arith.constant dense<0.000000e+00> : vector<16x128xf32>
    %127 = tpu.matmul %126, %125, %cst_37 {dimension_numbers = #tpu.dot_dimension_numbers<[1], [0], [0], [1], [0, 0, 1, 1], [], []>} : vector<16x16xbf16>, vector<16x128xbf16>, vector<16x128xf32> -> vector<16x128xf32>
    %128 = arith.addf %96, %127 : vector<16x128xf32>
    %c48_i32_38 = arith.constant 48 : i32
    %129 = vector.broadcast %c48_i32_38 : i32 to vector<1x128xi32>
    %130 = arith.cmpi sge, %31, %129 : vector<1x128xi32>
    %c64_i32 = arith.constant 64 : i32
    %131 = vector.broadcast %c64_i32 : i32 to vector<1x128xi32>
    %132 = arith.cmpi slt, %31, %131 : vector<1x128xi32>
    %133 = arith.andi %130, %132 : vector<1x128xi1>
    %cst_39 = arith.constant 2.500000e-01 : f32
    %cst_40 = arith.constant 0.000000e+00 : f32
    %134 = vector.broadcast %cst_39 : f32 to vector<1x128xf32>
    %135 = vector.broadcast %cst_40 : f32 to vector<1x128xf32>
    %136 = arith.select %133, %134, %135 : vector<1x128xi1>, vector<1x128xf32>
    %137 = vector.broadcast %136 : vector<1x128xf32> to vector<16x128xf32>
    %138 = arith.mulf %22, %137 : vector<16x128xf32>
    %139 = arith.truncf %138 : vector<16x128xf32> to vector<16x128xbf16>
    %cst_41 = arith.constant dense<0.000000e+00> : vector<16x16xf32>
    %140 = tpu.matmul %139, %29, %cst_41 {dimension_numbers = #tpu.dot_dimension_numbers<[1], [1], [0], [0], [0, 0, 1, 0], [], []>} : vector<16x128xbf16>, vector<16x128xbf16>, vector<16x16xf32> -> vector<16x16xf32>
    %141 = arith.addf %140, %30 : vector<16x16xf32>
    %cst_42 = arith.constant dense<0xFF800000> : vector<16xf32>
    %142 = vector.multi_reduction <maximumf>, %141, %cst_42 [1] : vector<16x16xf32> to vector<16xf32>
    %143 = vector.shape_cast %142 : vector<16xf32> to vector<16x1xf32>
    %144 = vector.broadcast %143 : vector<16x1xf32> to vector<16x16xf32>
    %145 = arith.subf %141, %144 : vector<16x16xf32>
    %146 = math.exp %145 : vector<16x16xf32>
    %cst_43 = arith.constant dense<0.000000e+00> : vector<16xf32>
    %147 = vector.multi_reduction <add>, %146, %cst_43 [1] : vector<16x16xf32> to vector<16xf32>
    %148 = vector.shape_cast %147 : vector<16xf32> to vector<16x1xf32>
    %149 = tpu.reciprocal %148 {approx = true} : vector<16x1xf32> -> vector<16x1xf32>
    %150 = vector.broadcast %149 : vector<16x1xf32> to vector<16x16xf32>
    %151 = arith.mulf %146, %150 : vector<16x16xf32>
    %cst_44 = arith.constant 1.000000e+00 : f32
    %cst_45 = arith.constant 0.000000e+00 : f32
    %152 = vector.broadcast %cst_44 : f32 to vector<1x128xf32>
    %153 = vector.broadcast %cst_45 : f32 to vector<1x128xf32>
    %154 = arith.select %133, %152, %153 : vector<1x128xi1>, vector<1x128xf32>
    %155 = vector.broadcast %154 : vector<1x128xf32> to vector<16x128xf32>
    %156 = arith.mulf %28, %155 : vector<16x128xf32>
    %157 = arith.truncf %156 : vector<16x128xf32> to vector<16x128xbf16>
    %158 = arith.truncf %151 : vector<16x16xf32> to vector<16x16xbf16>
    %cst_46 = arith.constant dense<0.000000e+00> : vector<16x128xf32>
    %159 = tpu.matmul %158, %157, %cst_46 {dimension_numbers = #tpu.dot_dimension_numbers<[1], [0], [0], [1], [0, 0, 1, 1], [], []>} : vector<16x16xbf16>, vector<16x128xbf16>, vector<16x128xf32> -> vector<16x128xf32>
    %160 = arith.addf %128, %159 : vector<16x128xf32>
    %161 = arith.truncf %160 : vector<16x128xf32> to vector<16x128xbf16>
    %c0_47 = arith.constant 0 : index
    %c0_48 = arith.constant 0 : index
    %c0_49 = arith.constant 0 : index
    %162 = vector.load %arg5[%c0_47, %c0_48, %c0_49] : memref<1x128x128xbf16, #tpu.memory_space<vmem>>, vector<1x128x128xbf16>
    %163 = vector.shape_cast %162 : vector<1x128x128xbf16> to vector<128x128xbf16>
    %cst_50 = arith.constant dense<0.000000e+00> : vector<16x128xf32>
    %164 = tpu.matmul %161, %163, %cst_50 {dimension_numbers = #tpu.dot_dimension_numbers<[1], [0], [0], [1], [0, 0, 1, 1], [], []>} : vector<16x128xbf16>, vector<128x128xbf16>, vector<16x128xf32> -> vector<16x128xf32>
    %165 = vector.broadcast %8 : vector<1x128xf32> to vector<16x128xf32>
    %166 = arith.addf %164, %165 : vector<16x128xf32>
    %167 = arith.addf %15, %166 : vector<16x128xf32>
    %cst_51 = arith.constant dense<0.000000e+00> : vector<16xf32>
    %168 = vector.multi_reduction <add>, %167, %cst_51 [1] : vector<16x128xf32> to vector<16xf32>
    %169 = vector.shape_cast %168 : vector<16xf32> to vector<16x1xf32>
    %cst_52 = arith.constant 1.562500e-02 : f32
    %170 = vector.broadcast %cst_52 : f32 to vector<16x1xf32>
    %171 = arith.mulf %169, %170 : vector<16x1xf32>
    %172 = arith.mulf %167, %167 : vector<16x128xf32>
    %cst_53 = arith.constant dense<0.000000e+00> : vector<16xf32>
    %173 = vector.multi_reduction <add>, %172, %cst_53 [1] : vector<16x128xf32> to vector<16xf32>
    %174 = vector.shape_cast %173 : vector<16xf32> to vector<16x1xf32>
    %cst_54 = arith.constant 1.562500e-02 : f32
    %175 = vector.broadcast %cst_54 : f32 to vector<16x1xf32>
    %176 = arith.mulf %174, %175 : vector<16x1xf32>
    %177 = arith.mulf %171, %171 : vector<16x1xf32>
    %178 = arith.subf %176, %177 : vector<16x1xf32>
    %cst_55 = arith.constant 9.99999974E-6 : f32
    %179 = vector.broadcast %cst_55 : f32 to vector<16x1xf32>
    %180 = arith.addf %178, %179 : vector<16x1xf32>
    %181 = math.rsqrt %180 : vector<16x1xf32>
    %182 = vector.broadcast %171 : vector<16x1xf32> to vector<16x128xf32>
    %183 = arith.subf %167, %182 : vector<16x128xf32>
    %184 = vector.broadcast %181 : vector<16x1xf32> to vector<16x128xf32>
    %185 = arith.mulf %183, %184 : vector<16x128xf32>
    %186 = vector.broadcast %11 : vector<1x128xf32> to vector<16x128xf32>
    %187 = arith.mulf %185, %186 : vector<16x128xf32>
    %188 = vector.broadcast %12 : vector<1x128xf32> to vector<16x128xf32>
    %189 = arith.addf %187, %188 : vector<16x128xf32>
    %190 = arith.truncf %189 : vector<16x128xf32> to vector<16x128xbf16>
    %c0_56 = arith.constant 0 : index
    %c0_57 = arith.constant 0 : index
    %c0_58 = arith.constant 0 : index
    %191 = vector.load %arg6[%c0_56, %c0_57, %c0_58] : memref<1x128x128xbf16, #tpu.memory_space<vmem>>, vector<1x128x128xbf16>
    %192 = vector.shape_cast %191 : vector<1x128x128xbf16> to vector<128x128xbf16>
    %cst_59 = arith.constant dense<0.000000e+00> : vector<16x128xf32>
    %193 = tpu.matmul %190, %192, %cst_59 {dimension_numbers = #tpu.dot_dimension_numbers<[1], [0], [0], [1], [0, 0, 1, 1], [], []>} : vector<16x128xbf16>, vector<128x128xbf16>, vector<16x128xf32> -> vector<16x128xf32>
    %194 = vector.broadcast %9 : vector<1x128xf32> to vector<16x128xf32>
    %195 = arith.addf %193, %194 : vector<16x128xf32>
    %cst_60 = arith.constant 0.636619746 : f32
    %196 = math.sqrt %cst_60 : f32
    %cst_61 = arith.constant 5.000000e-01 : f32
    %197 = vector.broadcast %cst_61 : f32 to vector<16x128xf32>
    %198 = arith.mulf %197, %195 : vector<16x128xf32>
    %cst_62 = arith.constant 4.471500e-02 : f32
    %199 = vector.broadcast %cst_62 : f32 to vector<16x128xf32>
    %200 = arith.mulf %199, %195 : vector<16x128xf32>
    %201 = arith.mulf %200, %195 : vector<16x128xf32>
    %202 = arith.mulf %201, %195 : vector<16x128xf32>
    %203 = arith.addf %195, %202 : vector<16x128xf32>
    %204 = vector.broadcast %196 : f32 to vector<16x128xf32>
    %205 = arith.mulf %204, %203 : vector<16x128xf32>
    %206 = math.tanh %205 : vector<16x128xf32>
    %cst_63 = arith.constant 1.000000e+00 : f32
    %207 = vector.broadcast %cst_63 : f32 to vector<16x128xf32>
    %208 = arith.addf %207, %206 : vector<16x128xf32>
    %209 = arith.mulf %198, %208 : vector<16x128xf32>
    %210 = arith.truncf %209 : vector<16x128xf32> to vector<16x128xbf16>
    %c0_64 = arith.constant 0 : index
    %c0_65 = arith.constant 0 : index
    %c0_66 = arith.constant 0 : index
    %211 = vector.load %arg7[%c0_64, %c0_65, %c0_66] : memref<1x128x128xbf16, #tpu.memory_space<vmem>>, vector<1x128x128xbf16>
    %212 = vector.shape_cast %211 : vector<1x128x128xbf16> to vector<128x128xbf16>
    %cst_67 = arith.constant dense<0.000000e+00> : vector<16x128xf32>
    %213 = tpu.matmul %210, %212, %cst_67 {dimension_numbers = #tpu.dot_dimension_numbers<[1], [0], [0], [1], [0, 0, 1, 1], [], []>} : vector<16x128xbf16>, vector<128x128xbf16>, vector<16x128xf32> -> vector<16x128xf32>
    %214 = vector.broadcast %10 : vector<1x128xf32> to vector<16x128xf32>
    %215 = arith.addf %213, %214 : vector<16x128xf32>
    %216 = arith.addf %189, %215 : vector<16x128xf32>
    %cst_68 = arith.constant dense<0.000000e+00> : vector<16xf32>
    %217 = vector.multi_reduction <add>, %216, %cst_68 [1] : vector<16x128xf32> to vector<16xf32>
    %218 = vector.shape_cast %217 : vector<16xf32> to vector<16x1xf32>
    %cst_69 = arith.constant 1.562500e-02 : f32
    %219 = vector.broadcast %cst_69 : f32 to vector<16x1xf32>
    %220 = arith.mulf %218, %219 : vector<16x1xf32>
    %221 = arith.mulf %216, %216 : vector<16x128xf32>
    %cst_70 = arith.constant dense<0.000000e+00> : vector<16xf32>
    %222 = vector.multi_reduction <add>, %221, %cst_70 [1] : vector<16x128xf32> to vector<16xf32>
    %223 = vector.shape_cast %222 : vector<16xf32> to vector<16x1xf32>
    %cst_71 = arith.constant 1.562500e-02 : f32
    %224 = vector.broadcast %cst_71 : f32 to vector<16x1xf32>
    %225 = arith.mulf %223, %224 : vector<16x1xf32>
    %226 = arith.mulf %220, %220 : vector<16x1xf32>
    %227 = arith.subf %225, %226 : vector<16x1xf32>
    %cst_72 = arith.constant 9.99999974E-6 : f32
    %228 = vector.broadcast %cst_72 : f32 to vector<16x1xf32>
    %229 = arith.addf %227, %228 : vector<16x1xf32>
    %230 = math.rsqrt %229 : vector<16x1xf32>
    %231 = vector.broadcast %220 : vector<16x1xf32> to vector<16x128xf32>
    %232 = arith.subf %216, %231 : vector<16x128xf32>
    %233 = vector.broadcast %230 : vector<16x1xf32> to vector<16x128xf32>
    %234 = arith.mulf %232, %233 : vector<16x128xf32>
    %235 = vector.broadcast %13 : vector<1x128xf32> to vector<16x128xf32>
    %236 = arith.mulf %234, %235 : vector<16x128xf32>
    %237 = vector.broadcast %14 : vector<1x128xf32> to vector<16x128xf32>
    %238 = arith.addf %236, %237 : vector<16x128xf32>
    %c0_73 = arith.constant 0 : index
    %c0_74 = arith.constant 0 : index
    %239 = vector.load %arg9[%c0_73, %c0_74] : memref<16x128xf32, #tpu.memory_space<vmem>>, vector<16x128xf32>
    tpu.vector_store %arg9[%c0_73, %c0_74], %238 {strides = array<i32>} : memref<16x128xf32, #tpu.memory_space<vmem>>, vector<16x128xf32>,
    return
  }
  func.func @transform_0(%arg0: i32) -> (i32, i32) {
    %c0_i32 = arith.constant 0 : i32
    %c0_i32_0 = arith.constant 0 : i32
    %c0_i32_1 = arith.constant 0 : i32
    return %c0_i32, %c0_i32_0 : i32, i32
  }
  func.func @transform_1(%arg0: i32) -> (i32, i32) {
    %c0_i32 = arith.constant 0 : i32
    %c0_i32_0 = arith.constant 0 : i32
    %c0_i32_1 = arith.constant 0 : i32
    return %c0_i32, %c0_i32_0 : i32, i32
  }
  func.func @transform_2(%arg0: i32) -> (i32, i32) {
    %c0_i32 = arith.constant 0 : i32
    %c0_i32_0 = arith.constant 0 : i32
    %c0_i32_1 = arith.constant 0 : i32
    return %c0_i32, %c0_i32_0 : i32, i32
  }
  func.func @transform_3(%arg0: i32) -> (i32, i32, i32) {
    %c0_i32 = arith.constant 0 : i32
    %c0_i32_0 = arith.constant 0 : i32
    %c0_i32_1 = arith.constant 0 : i32
    return %arg0, %c0_i32, %c0_i32_0 : i32, i32, i32
  }
  func.func @transform_4(%arg0: i32) -> (i32, i32, i32) {
    %c0_i32 = arith.constant 0 : i32
    %c0_i32_0 = arith.constant 0 : i32
    %c0_i32_1 = arith.constant 0 : i32
    return %arg0, %c0_i32, %c0_i32_0 : i32, i32, i32
  }
  func.func @transform_5(%arg0: i32) -> (i32, i32, i32) {
    %c0_i32 = arith.constant 0 : i32
    %c0_i32_0 = arith.constant 0 : i32
    %c0_i32_1 = arith.constant 0 : i32
    return %arg0, %c0_i32, %c0_i32_0 : i32, i32, i32
  }
  func.func @transform_6(%arg0: i32) -> (i32, i32, i32) {
    %c0_i32 = arith.constant 0 : i32
    %c0_i32_0 = arith.constant 0 : i32
    %c0_i32_1 = arith.constant 0 : i32
    return %arg0, %c0_i32, %c0_i32_0 : i32, i32, i32
  }
  func.func @transform_7(%arg0: i32) -> (i32, i32, i32) {
    %c0_i32 = arith.constant 0 : i32
    %c0_i32_0 = arith.constant 0 : i32
    %c0_i32_1 = arith.constant 0 : i32
    return %arg0, %c0_i32, %c0_i32_0 : i32, i32, i32
  }
  func.func @transform_8(%arg0: i32) -> (i32, i32) {
    %c0_i32 = arith.constant 0 : i32
    %c0_i32_0 = arith.constant 0 : i32
    %c0_i32_1 = arith.constant 0 : i32
    return %c0_i32, %c0_i32_0 : i32, i32
  }
}

</mosaic_0001>

<llo_original>
// kernel: _forward_jit.1
$region0: #{_forward_jit.1}
  #allocation0 [shape = 'u32[]', space=smem, size = 0x4, offset = 0x4, fixed_abs, tag = 'smem constant byte address 0x4 - core index']
  #allocation1 [shape = 'u32[144,128]{1,0:T(1,128)}', space=vmem, size = 0x12000, scoped, tag = 'internal scratch']
  %s0 = inlined_call_operand.vmem [shape: f32[16,128], index: 0, kind: input, shape index: {}]
  %s1 = inlined_call_operand.vmem [shape: f32[16,16], index: 1, kind: input, shape index: {}]
  %s2 = inlined_call_operand.vmem [shape: f32[2,128], index: 2, kind: input, shape index: {}]
  %s3 = inlined_call_operand.vmem [shape: bf16[2,128,384], index: 3, kind: input, shape index: {}]
  %s4 = inlined_call_operand.vmem [shape: bf16[2,128,128], index: 4, kind: input, shape index: {}]
  %s5 = inlined_call_operand.vmem [shape: bf16[2,128,128], index: 5, kind: input, shape index: {}]
  %s6 = inlined_call_operand.hbm [shape: bf16[2,128,128], index: 6, kind: input, shape index: {}]
  %s7 = inlined_call_operand.vmem [shape: f32[2,10,128], index: 7, kind: input, shape index: {}]
  %s8 = inlined_call_operand.vmem [shape: f32[16,128], index: 8, kind: output, shape index: {}]
  %s9 = sld [smem:[#allocation0]]
  $region73: #{_forward_jit.1} parent=0
    _
  %s11 = ssub.s32 1, %s9
  %s12 = scalar_select 0, %s11, %s9
  $region1: #{_forward_jit.1} parent=0
    #allocation2 [shape = 'u8[65536]{0}', space=vmem, size = 0x10000, scoped, tag = 'input window, operand 6']
    #allocation3 [shape = 's32[2]{0}', space=sflag, size = 0x8, scoped, tag = 'scoped memory for _forward_jit.1']
    %13 = vsyncpa [#allocation3], 0
    %s14 = scalar_lea.sflag [#allocation3], 1
    %15 = vsyncpa %s14, 0
    loop: start=0, step=1, limit=4
    $region2: #{_forward_jit.1} parent=1 // loop_pre_header
      _
    $region3: #{_forward_jit.1} parent=1 // loop_header
      %s17 = sphi 0, %s21
      %p18 = scmp.ge.s32.totalorder %s17, 4
      %s25 = sphi 0, %s25
      %s27 = sphi 0, %s25
      %s28 = sphi 0, %s27
      %s42 = sphi 0, %s28
      %s46 = sphi 0, %s46
      %s48 = sphi 0, %s46
      %s49 = sphi 0, %s48
      %s63 = sphi 0, %s49
      %s67 = sphi 0, %s67
      %s69 = sphi 0, %s67
      %s70 = sphi 0, %s69
      %s84 = sphi 0, %s70
      %s90 = sphi 0, %s92
      %s93 = sphi 0, %s90
      %s94 = sphi 0, %s93
      %s110 = sphi 0, %s94
      %s116 = sphi 0, %s118
      %s119 = sphi 0, %s116
      %s120 = sphi 0, %s119
      %s136 = sphi 0, %s120
      %s142 = sphi 0, %s144
      %s145 = sphi 0, %s142
      %s146 = sphi 0, %s145
      %s162 = sphi 0, %s146
      %s168 = sphi 0, %s170
      %s171 = sphi 0, %s168
      %s172 = sphi 0, %s171
      %s188 = sphi 0, %s172
      %s194 = sphi 0, %s196
      %s197 = sphi 0, %s194
      %s198 = sphi 0, %s197
      %s214 = sphi 0, %s198
      %s218 = sphi 0, %s218
      %s220 = sphi 0, %s218
      %s221 = sphi 0, %s220
      %s235 = sphi 0, %s221
    $region4: #{_forward_jit.1} parent=1 // loop_header_branch
      %20 = sbr.rel (%p18) target = $region8
    $region5: #{_forward_jit.1} parent=1 // loop_body
      %s22 = ssub.s32 %s17, 1
      %s23 = ssub.s32 %s17, 2
      %s24 = sadd.s32 %s17, 1
      %s26 = sadd.s32 %s25, 1
      %p29 = scmp.eq.s32.totalorder %s17, 1
      %p30 = scmp.ne.s32.totalorder %s25, %s27
      %p31 = scmp.eq.s32.totalorder %s17, 0
      %p32 = por %p30, %p31
      %p33 = scmp.ne.s32.totalorder %s25, %s27
      %p34 = scmp.eq.s32.totalorder %s22, 1
      %p35 = por %p33, %p34
      %p36 = scmp.ne.s32.totalorder %s27, %s28
      %p37 = scmp.eq.s32.totalorder %s22, 0
      %p38 = por %p36, %p37
      %p39 = scmp.ne.s32.totalorder %s27, %s28
      %p40 = scmp.eq.s32.totalorder %s23, 1
      %p41 = por %p39, %p40
      %p43 = scmp.ne.s32.totalorder %s28, %s42
      %p44 = scmp.eq.s32.totalorder %s23, 0
      %p45 = por %p43, %p44
      %s47 = sadd.s32 %s46, 1
      %p50 = scmp.eq.s32.totalorder %s17, 1
      %p51 = scmp.ne.s32.totalorder %s46, %s48
      %p52 = scmp.eq.s32.totalorder %s17, 0
      %p53 = por %p51, %p52
      %p54 = scmp.ne.s32.totalorder %s46, %s48
      %p55 = scmp.eq.s32.totalorder %s22, 1
      %p56 = por %p54, %p55
      %p57 = scmp.ne.s32.totalorder %s48, %s49
      %p58 = scmp.eq.s32.totalorder %s22, 0
      %p59 = por %p57, %p58
      %p60 = scmp.ne.s32.totalorder %s48, %s49
      %p61 = scmp.eq.s32.totalorder %s23, 1
      %p62 = por %p60, %p61
      %p64 = scmp.ne.s32.totalorder %s49, %s63
      %p65 = scmp.eq.s32.totalorder %s23, 0
      %p66 = por %p64, %p65
      %s68 = sadd.s32 %s67, 1
      %p71 = scmp.eq.s32.totalorder %s17, 1
      %p72 = scmp.ne.s32.totalorder %s67, %s69
      %p73 = scmp.eq.s32.totalorder %s17, 0
      %p74 = por %p72, %p73
      %p75 = scmp.ne.s32.totalorder %s67, %s69
      %p76 = scmp.eq.s32.totalorder %s22, 1
      %p77 = por %p75, %p76
      %p78 = scmp.ne.s32.totalorder %s69, %s70
      %p79 = scmp.eq.s32.totalorder %s22, 0
      %p80 = por %p78, %p79
      %p81 = scmp.ne.s32.totalorder %s69, %s70
      %p82 = scmp.eq.s32.totalorder %s23, 1
      %p83 = por %p81, %p82
      %p85 = scmp.ne.s32.totalorder %s70, %s84
      %p86 = scmp.eq.s32.totalorder %s23, 0
      %p87 = por %p85, %p86
      %s88 = ssub.s32 %s17, %s24
      %p89 = scmp.eq.s32.totalorder %s88, 0
      %s91 = sadd.s32 %s90, 1
      %s92 = scalar_select %p89, %s90, %s91
      %p95 = pneg %p89
      %p96 = scmp.eq.s32.totalorder %s17, 1
      %p97 = por %p95, %p96
      %p98 = scmp.ne.s32.totalorder %s90, %s93
      %p99 = scmp.eq.s32.totalorder %s17, 0
      %p100 = por %p98, %p99
      %p101 = scmp.ne.s32.totalorder %s90, %s93
      %p102 = scmp.eq.s32.totalorder %s22, 1
      %p103 = por %p101, %p102
      %p104 = scmp.ne.s32.totalorder %s93, %s94
      %p105 = scmp.eq.s32.totalorder %s22, 0
      %p106 = por %p104, %p105
      %p107 = scmp.ne.s32.totalorder %s93, %s94
      %p108 = scmp.eq.s32.totalorder %s23, 1
      %p109 = por %p107, %p108
      %p111 = scmp.ne.s32.totalorder %s94, %s110
      %p112 = scmp.eq.s32.totalorder %s23, 0
      %p113 = por %p111, %p112
      %s114 = ssub.s32 %s17, %s24
      %p115 = scmp.eq.s32.totalorder %s114, 0
      %s117 = sadd.s32 %s116, 1
      %s118 = scalar_select %p115, %s116, %s117
      %p121 = pneg %p115
      %p122 = scmp.eq.s32.totalorder %s17, 1
      %p123 = por %p121, %p122
      %p124 = scmp.ne.s32.totalorder %s116, %s119
      %p125 = scmp.eq.s32.totalorder %s17, 0
      %p126 = por %p124, %p125
      %p127 = scmp.ne.s32.totalorder %s116, %s119
      %p128 = scmp.eq.s32.totalorder %s22, 1
      %p129 = por %p127, %p128
      %p130 = scmp.ne.s32.totalorder %s119, %s120
      %p131 = scmp.eq.s32.totalorder %s22, 0
      %p132 = por %p130, %p131
      %p133 = scmp.ne.s32.totalorder %s119, %s120
      %p134 = scmp.eq.s32.totalorder %s23, 1
      %p135 = por %p133, %p134
      %p137 = scmp.ne.s32.totalorder %s120, %s136
      %p138 = scmp.eq.s32.totalorder %s23, 0
      %p139 = por %p137, %p138
      %s140 = ssub.s32 %s17, %s24
      %p141 = scmp.eq.s32.totalorder %s140, 0
      %s143 = sadd.s32 %s142, 1
      %s144 = scalar_select %p141, %s142, %s143
      %p147 = pneg %p141
      %p148 = scmp.eq.s32.totalorder %s17, 1
      %p149 = por %p147, %p148
      %p150 = scmp.ne.s32.totalorder %s142, %s145
      %p151 = scmp.eq.s32.totalorder %s17, 0
      %p152 = por %p150, %p151
      %p153 = scmp.ne.s32.totalorder %s142, %s145
      %p154 = scmp.eq.s32.totalorder %s22, 1
      %p155 = por %p153, %p154
      %p156 = scmp.ne.s32.totalorder %s145, %s146
      %p157 = scmp.eq.s32.totalorder %s22, 0
      %p158 = por %p156, %p157
      %p159 = scmp.ne.s32.totalorder %s145, %s146
      %p160 = scmp.eq.s32.totalorder %s23, 1
      %p161 = por %p159, %p160
      %p163 = scmp.ne.s32.totalorder %s146, %s162
      %p164 = scmp.eq.s32.totalorder %s23, 0
      %p165 = por %p163, %p164
      %s166 = ssub.s32 %s17, %s24
      %p167 = scmp.eq.s32.totalorder %s166, 0
      %s169 = sadd.s32 %s168, 1
      %s170 = scalar_select %p167, %s168, %s169
      %p173 = pneg %p167
      %p174 = scmp.eq.s32.totalorder %s17, 1
      %p175 = por %p173, %p174
      %p176 = scmp.ne.s32.totalorder %s168, %s171
      %p177 = scmp.eq.s32.totalorder %s17, 0
      %p178 = por %p176, %p177
      %p179 = scmp.ne.s32.totalorder %s168, %s171
      %p180 = scmp.eq.s32.totalorder %s22, 1
      %p181 = por %p179, %p180
      %p182 = scmp.ne.s32.totalorder %s171, %s172
      %p183 = scmp.eq.s32.totalorder %s22, 0
      %p184 = por %p182, %p183
      %p185 = scmp.ne.s32.totalorder %s171, %s172
      %p186 = scmp.eq.s32.totalorder %s23, 1
      %p187 = por %p185, %p186
      %p189 = scmp.ne.s32.totalorder %s172, %s188
      %p190 = scmp.eq.s32.totalorder %s23, 0
      %p191 = por %p189, %p190
      %s192 = ssub.s32 %s17, %s24
      %p193 = scmp.eq.s32.totalorder %s192, 0
      %s195 = sadd.s32 %s194, 1
      %s196 = scalar_select %p193, %s194, %s195
      %p199 = pneg %p193
      %p200 = scmp.eq.s32.totalorder %s17, 1
      %p201 = por %p199, %p200
      %p202 = scmp.ne.s32.totalorder %s194, %s197
      %p203 = scmp.eq.s32.totalorder %s17, 0
      %p204 = por %p202, %p203
      %p205 = scmp.ne.s32.totalorder %s194, %s197
      %p206 = scmp.eq.s32.totalorder %s22, 1
      %p207 = por %p205, %p206
      %p208 = scmp.ne.s32.totalorder %s197, %s198
      %p209 = scmp.eq.s32.totalorder %s22, 0
      %p210 = por %p208, %p209
      %p211 = scmp.ne.s32.totalorder %s197, %s198
      %p212 = scmp.eq.s32.totalorder %s23, 1
      %p213 = por %p211, %p212
      %p215 = scmp.ne.s32.totalorder %s198, %s214
      %p216 = scmp.eq.s32.totalorder %s23, 0
      %p217 = por %p215, %p216
      %s219 = sadd.s32 %s218, 1
      %p222 = scmp.eq.s32.totalorder %s17, 1
      %p223 = scmp.ne.s32.totalorder %s218, %s220
      %p224 = scmp.eq.s32.totalorder %s17, 0
      %p225 = por %p223, %p224
      %p226 = scmp.ne.s32.totalorder %s218, %s220
      %p227 = scmp.eq.s32.totalorder %s22, 1
      %p228 = por %p226, %p227
      %p229 = scmp.ne.s32.totalorder %s220, %s221
      %p230 = scmp.eq.s32.totalorder %s22, 0
      %p231 = por %p229, %p230
      %p232 = scmp.ne.s32.totalorder %s220, %s221
      %p233 = scmp.eq.s32.totalorder %s23, 1
      %p234 = por %p232, %p233
      %p236 = scmp.ne.s32.totalorder %s221, %s235
      %p237 = scmp.eq.s32.totalorder %s23, 0
      %p238 = por %p236, %p237
      %p239 = scmp.le.s32.totalorder 1, %s17
      %p240 = scmp.lt.s32.totalorder %s17, 3
      %p241 = pnand %p239, %p240
      %p242 = pneg %p241
      // Predicated region
      $region9: #{_forward_jit.1} parent=5 // pred_check
        _
      $region10: #{_forward_jit.1} parent=5 // pred_check_branch
        %244 = sbr.rel (%p241) target = $region12
      $region11: #{_forward_jit.1} parent=5 // pred_region
        %s245 = ssub.s32 %s17, 1
        // Predicated region
        $region13: #{_forward_jit.1} parent=11 // pred_check
          %p246 = pneg %p38
        $region14: #{_forward_jit.1} parent=11 // pred_check_branch
          %248 = sbr.rel (%p246) target = $region16
        $region15: #{_forward_jit.1} parent=11 // pred_region
          _
        $region16: #{_forward_jit.1} parent=11 // pred_fallthru
          _
        // Predicated region
        $region17: #{_forward_jit.1} parent=11 // pred_check
          %p249 = pneg %p59
        $region18: #{_forward_jit.1} parent=11 // pred_check_branch
          %251 = sbr.rel (%p249) target = $region20
        $region19: #{_forward_jit.1} parent=11 // pred_region
          _
        $region20: #{_forward_jit.1} parent=11 // pred_fallthru
          _
        // Predicated region
        $region21: #{_forward_jit.1} parent=11 // pred_check
          %p252 = pneg %p80
        $region22: #{_forward_jit.1} parent=11 // pred_check_branch
          %254 = sbr.rel (%p252) target = $region24
        $region23: #{_forward_jit.1} parent=11 // pred_region
          _
        $region24: #{_forward_jit.1} parent=11 // pred_fallthru
          _
      $region12: #{_forward_jit.1} parent=5 // pred_fallthru
        _
      %p255 = scmp.lt.s32.totalorder %s17, 2
      // Predicated region
      $region25: #{_forward_jit.1} parent=5 // pred_check
        %p256 = pneg %p255
      $region26: #{_forward_jit.1} parent=5 // pred_check_branch
        %258 = sbr.rel (%p256) target = $region28
      $region27: #{_forward_jit.1} parent=5 // pred_region
        // Predicated region
        $region29: #{_forward_jit.1} parent=27 // pred_check
          %p259 = pneg %p100
        $region30: #{_forward_jit.1} parent=27 // pred_check_branch
          %261 = sbr.rel (%p259) target = $region32
        $region31: #{_forward_jit.1} parent=27 // pred_region
          %p262 = scmp.lt.s32.totalorder %s17, 1
          %s263 = scalar_select %p262, %s17, 1
          %s264 = smul.addr %s263, 48
          %s265 = smul.addr %s264, 4
          %s266 = scalar_lea.vmem %s3, %s265
        $region32: #{_forward_jit.1} parent=27 // pred_fallthru
          _
        // Predicated region
        $region33: #{_forward_jit.1} parent=27 // pred_check
          %p267 = pneg %p126
        $region34: #{_forward_jit.1} parent=27 // pred_check_branch
          %269 = sbr.rel (%p267) target = $region36
        $region35: #{_forward_jit.1} parent=27 // pred_region
          %p270 = scmp.lt.s32.totalorder %s17, 1
          %s271 = scalar_select %p270, %s17, 1
          %s272 = smul.addr %s271, 16
          %s273 = smul.addr %s272, 4
          %s274 = scalar_lea.vmem %s4, %s273
        $region36: #{_forward_jit.1} parent=27 // pred_fallthru
          _
        // Predicated region
        $region37: #{_forward_jit.1} parent=27 // pred_check
          %p275 = pneg %p152
        $region38: #{_forward_jit.1} parent=27 // pred_check_branch
          %277 = sbr.rel (%p275) target = $region40
        $region39: #{_forward_jit.1} parent=27 // pred_region
          %p278 = scmp.lt.s32.totalorder %s17, 1
          %s279 = scalar_select %p278, %s17, 1
          %s280 = smul.addr %s279, 16
          %s281 = smul.addr %s280, 4
          %s282 = scalar_lea.vmem %s5, %s281
        $region40: #{_forward_jit.1} parent=27 // pred_fallthru
          _
        // Predicated region
        $region41: #{_forward_jit.1} parent=27 // pred_check
          %p283 = pneg %p178
        $region42: #{_forward_jit.1} parent=27 // pred_check_branch
          %285 = sbr.rel (%p283) target = $region44
        $region43: #{_forward_jit.1} parent=27 // pred_region
          %s286 = sand.u32 %s168, 1
          %s287 = scalar_lea.sflag [#allocation3], %s286
          %s288 = sand.u32 %s168, 1
          %s289 = smul.addr %s288, 64
          %s290 = scalar_lea.vmem [#allocation2], %s289
          %s292 = ssub.s32 1024, 1024
          %293 = vsyncadd %s287, %s292
          %s294 = smul.addr %s17, 16
          %s295 = smul.addr %s294, 64
          %s296 = scalar_lea.hbm %s6, %s295
          %s297 = sshll.u32 %s290, 4
          %s298 = int_to_ptr.vmem [resolvable:$true] %s297
          %303 = dma.hbm_to_vmem [thread:$0]  %s296, 1024, %s298, %s287, 64, 64, 4
        $region44: #{_forward_jit.1} parent=27 // pred_fallthru
          _
        // Predicated region
        $region45: #{_forward_jit.1} parent=27 // pred_check
          %p304 = pneg %p204
        $region46: #{_forward_jit.1} parent=27 // pred_check_branch
          %306 = sbr.rel (%p304) target = $region48
        $region47: #{_forward_jit.1} parent=27 // pred_region
          %p307 = scmp.lt.s32.totalorder %s17, 1
          %s308 = scalar_select %p307, %s17, 1
          %s309 = smul.addr %s308, 2
          %s310 = smul.addr %s309, 8
          %s311 = scalar_lea.vmem %s7, %s310
        $region48: #{_forward_jit.1} parent=27 // pred_fallthru
          _
      $region28: #{_forward_jit.1} parent=5 // pred_fallthru
        _
      %p312 = scmp.le.s32.totalorder 1, %s17
      %p313 = scmp.lt.s32.totalorder %s17, 3
      %p314 = pnand %p312, %p313
      %p315 = pneg %p314
      // Predicated region
      $region49: #{_forward_jit.1} parent=5 // pred_check
        _
      $region50: #{_forward_jit.1} parent=5 // pred_check_branch
        %317 = sbr.rel (%p314) target = $region52
      $region51: #{_forward_jit.1} parent=5 // pred_region
        %s318 = ssub.s32 %s17, 1
        %s319 = sand.u32 %s171, 1
        %s320 = scalar_lea.sflag [#allocation3], %s319
        %s321 = sand.u32 %s171, 1
        %s322 = smul.addr %s321, 64
        %s323 = scalar_lea.vmem [#allocation2], %s322
        // Predicated region
        $region53: #{_forward_jit.1} parent=51 // pred_check
          %p324 = pneg %p184
        $region54: #{_forward_jit.1} parent=51 // pred_check_branch
          %326 = sbr.rel (%p324) target = $region56
        $region55: #{_forward_jit.1} parent=51 // pred_region
          %327 = dma.done %s320, 1024
        $region56: #{_forward_jit.1} parent=51 // pred_fallthru
          _
        %p328 = pneg %p38
        %p329 = pneg %p35
        %p330 = pneg %p59
        %p331 = pneg %p56
        %p332 = pneg %p80
        %p333 = pneg %p77
        %p334 = scmp.lt.s32.totalorder %s22, 1
        %s335 = scalar_select %p334, %s22, 1
        %s336 = smul.addr %s335, 48
        %s337 = smul.addr %s336, 4
        %s338 = scalar_lea.vmem %s3, %s337
        %p339 = pneg %p106
        %p340 = pneg %p103
        %p341 = scmp.lt.s32.totalorder %s22, 1
        %s342 = scalar_select %p341, %s22, 1
        %s343 = smul.addr %s342, 16
        %s344 = smul.addr %s343, 4
        %s345 = scalar_lea.vmem %s4, %s344
        %p346 = pneg %p132
        %p347 = pneg %p129
        %p348 = scmp.lt.s32.totalorder %s22, 1
        %s349 = scalar_select %p348, %s22, 1
        %s350 = smul.addr %s349, 16
        %s351 = smul.addr %s350, 4
        %s352 = scalar_lea.vmem %s5, %s351
        %p353 = pneg %p158
        %p354 = pneg %p155
        %s355 = sand.u32 %s171, 1
        %s356 = scalar_lea.sflag [#allocation3], %s355
        %s357 = sand.u32 %s171, 1
        %s358 = smul.addr %s357, 64
        %s359 = scalar_lea.vmem [#allocation2], %s358
        %p360 = pneg %p184
        %p361 = pneg %p181
        %p362 = scmp.lt.s32.totalorder %s22, 1
        %s363 = scalar_select %p362, %s22, 1
        %s364 = smul.addr %s363, 2
        %s365 = smul.addr %s364, 8
        %s366 = scalar_lea.vmem %s7, %s365
        %p367 = pneg %p210
        %p368 = pneg %p207
        %p369 = pneg %p231
        %p370 = pneg %p228
        %p371 = scmp.lt.s32.totalorder %s22, 1
        %s372 = scalar_select %p371, %s22, 1
        %s373 = smul.addr %s372, 48
        %s374 = smul.addr %s373, 4
        %s375 = scalar_lea.vmem %s3, %s374
        %p376 = scmp.lt.s32.totalorder %s22, 1
        %s377 = scalar_select %p376, %s22, 1
        %s378 = smul.addr %s377, 16
        %s379 = smul.addr %s378, 4
        %s380 = scalar_lea.vmem %s4, %s379
        %p381 = scmp.lt.s32.totalorder %s22, 1
        %s382 = scalar_select %p381, %s22, 1
        %s383 = smul.addr %s382, 16
        %s384 = smul.addr %s383, 4
        %s385 = scalar_lea.vmem %s5, %s384
        %p386 = scmp.lt.s32.totalorder %s22, 1
        %s387 = scalar_select %p386, %s22, 1
        %s388 = smul.addr %s387, 2
        %s389 = smul.addr %s388, 8
        %s390 = scalar_lea.vmem %s7, %s389
        %p392 = scmp.eq.s32.totalorder %s22, 0
        // Predicated region
        $region57: #{_forward_jit.1} parent=51 // pred_check
          %p393 = pneg %p392
        $region58: #{_forward_jit.1} parent=51 // pred_check_branch
          %395 = sbr.rel (%p393) target = $region60
        $region59: #{_forward_jit.1} parent=51 // pred_region
          %v396 = vld [vmem:[%s2] sm:$0x3]
          %v397 = vld [vmem:[%s0] sm:$0xff]
          %v398 = vld [vmem:[%s0 + $0x8] sm:$0xff]
          %399 = vadd.xlane.f32.xlu0 %v397
          %v400 = vpop.xlane.xlu0 %399
          %401 = vadd.xlane.f32.xlu0 %v398
          %v402 = vpop.xlane.xlu0 %401
          %v403 = vmul.f32 %v400, 0.015625
          %v404 = vmul.f32 %v402, 0.015625
          %v405 = vmul.f32 %v397, %v397
          %v406 = vmul.f32 %v398, %v398
          %407 = vadd.xlane.f32.xlu0 %v405
          %v408 = vpop.xlane.xlu0 %407
          %409 = vadd.xlane.f32.xlu0 %v406
          %v410 = vpop.xlane.xlu0 %409
          %v411 = vmul.f32 %v408, 0.015625
          %v412 = vmul.f32 %v410, 0.015625
          %v413 = vmul.f32 %v403, %v403
          %v414 = vmul.f32 %v404, %v404
          %v415 = vsub.f32 %v411, %v413
          %v416 = vsub.f32 %v412, %v414
          %v417 = vadd.f32 %v415, 1e-05
          %v418 = vadd.f32 %v416, 1e-05
          %v419 = vrsqrt.pop %v417
          %v420 = vrsqrt.pop %v418
          %v421 = vsub.f32 %v397, %v403
          %v422 = vsub.f32 %v398, %v404
          %v423 = vmul.f32 %v421, %v419
          %v424 = vmul.f32 %v422, %v420
          %v425 = vlaneseq
          %v426 = vshrl.u32 %v425, 7
          %v427 = vsub.s32 0, %v426
          %v428 = vrot.slane %v396, %v427
          %v429 = vmul.f32 %v423, %v428
          %v430 = vmul.f32 %v424, %v428
          %v431 = vlaneseq
          %v432 = vshrl.u32 %v431, 7
          %v433 = vsub.s32 1, %v432
          %v434 = vrot.slane %v396, %v433
          %v435 = vadd.f32 %v429, %v434
          %v436 = vadd.f32 %v430, %v434
          %437 = vst [vmem:[%s8] sm:$0xff] %v435
          %438 = vst [vmem:[%s8 + $0x8] sm:$0xff] %v436
        $region60: #{_forward_jit.1} parent=51 // pred_fallthru
          _
        %v439 = vld [vmem:[%s390] sm:$0xff]
        %v440 = vld [vmem:[%s390 + $0x8] sm:$0x3]
        %v441 = vld [vmem:[%s8] sm:$0xff]
        %v442 = vld [vmem:[%s8 + $0x8] sm:$0xff]
        %v443 = vpack.c.bf16 %v442, %v441
        %v444 = vld [vmem:[%s375] sm:$0xff]
        %v445 = vld [vmem:[%s375 + $0x8] sm:$0xf]
        %v446 = vld [vmem:[%s375 + $0xc] sm:$0xff]
        %v447 = vld [vmem:[%s375 + $0x14] sm:$0xf]
        %v448 = vld [vmem:[%s375 + $0x18] sm:$0xff]
        %v449 = vld [vmem:[%s375 + $0x20] sm:$0xf]
        %v450 = vld [vmem:[%s375 + $0x24] sm:$0xff]
        %v451 = vld [vmem:[%s375 + $0x2c] sm:$0xf]
        %v452 = vld [vmem:[%s375 + $0x30] sm:$0xff]
        %v453 = vld [vmem:[%s375 + $0x38] sm:$0xf]
        %v454 = vld [vmem:[%s375 + $0x3c] sm:$0xff]
        %v455 = vld [vmem:[%s375 + $0x44] sm:$0xf]
        %v456 = vld [vmem:[%s375 + $0x48] sm:$0xff]
        %v457 = vld [vmem:[%s375 + $0x50] sm:$0xf]
        %v458 = vld [vmem:[%s375 + $0x54] sm:$0xff]
        %v459 = vld [vmem:[%s375 + $0x5c] sm:$0xf]
        %v460 = vld [vmem:[%s375 + $0x60] sm:$0xff]
        %v461 = vld [vmem:[%s375 + $0x68] sm:$0xf]
        %v462 = vld [vmem:[%s375 + $0x6c] sm:$0xff]
        %v463 = vld [vmem:[%s375 + $0x74] sm:$0xf]
        %v464 = vld [vmem:[%s375 + $0x78] sm:$0xff]
        %v465 = vld [vmem:[%s375 + $0x80] sm:$0xf]
        %v466 = vld [vmem:[%s375 + $0x84] sm:$0xff]
        %v467 = vld [vmem:[%s375 + $0x8c] sm:$0xf]
        %v468 = vld [vmem:[%s375 + $0x90] sm:$0xff]
        %v469 = vld [vmem:[%s375 + $0x98] sm:$0xf]
        %v470 = vld [vmem:[%s375 + $0x9c] sm:$0xff]
        %v471 = vld [vmem:[%s375 + $0xa4] sm:$0xf]
        %v472 = vld [vmem:[%s375 + $0xa8] sm:$0xff]
        %v473 = vld [vmem:[%s375 + $0xb0] sm:$0xf]
        %v474 = vld [vmem:[%s375 + $0xb4] sm:$0xff]
        %v475 = vld [vmem:[%s375 + $0xbc] sm:$0xf]
        %v508 = vunpack.c.l.b16 %v444
        %v509 = vunpack.c.h.b16 %v444
        %v510 = vunpack.c.l.b16 %v445
        %v511 = vunpack.c.l.b16 %v446
        %v512 = vunpack.c.h.b16 %v446
        %v513 = vunpack.c.l.b16 %v447
        %v514 = vunpack.c.l.b16 %v448
        %v515 = vunpack.c.h.b16 %v448
        %v516 = vunpack.c.l.b16 %v449
        %v517 = vunpack.c.l.b16 %v450
        %v518 = vunpack.c.h.b16 %v450
        %v519 = vunpack.c.l.b16 %v451
        %v520 = vunpack.c.l.b16 %v452
        %v521 = vunpack.c.h.b16 %v452
        %v522 = vunpack.c.l.b16 %v453
        %v523 = vunpack.c.l.b16 %v454
        %v524 = vunpack.c.h.b16 %v454
        %v525 = vunpack.c.l.b16 %v455
        %v526 = vunpack.c.l.b16 %v456
        %v527 = vunpack.c.h.b16 %v456
        %v528 = vunpack.c.l.b16 %v457
        %v529 = vunpack.c.l.b16 %v458
        %v530 = vunpack.c.h.b16 %v458
        %v531 = vunpack.c.l.b16 %v459
        %v532 = vunpack.c.l.b16 %v460
        %v533 = vunpack.c.h.b16 %v460
        %v534 = vunpack.c.l.b16 %v461
        %v535 = vunpack.c.l.b16 %v462
        %v536 = vunpack.c.h.b16 %v462
        %v537 = vunpack.c.l.b16 %v463
        %v538 = vunpack.c.l.b16 %v464
        %v539 = vunpack.c.h.b16 %v464
        %v540 = vunpack.c.l.b16 %v465
        %v541 = vunpack.c.l.b16 %v466
        %v542 = vunpack.c.h.b16 %v466
        %v543 = vunpack.c.l.b16 %v467
        %v544 = vunpack.c.l.b16 %v468
        %v545 = vunpack.c.h.b16 %v468
        %v546 = vunpack.c.l.b16 %v469
        %v547 = vunpack.c.l.b16 %v470
        %v548 = vunpack.c.h.b16 %v470
        %v549 = vunpack.c.l.b16 %v471
        %v550 = vunpack.c.l.b16 %v472
        %v551 = vunpack.c.h.b16 %v472
        %v552 = vunpack.c.l.b16 %v473
        %v553 = vunpack.c.l.b16 %v474
        %v554 = vunpack.c.h.b16 %v474
        %v555 = vunpack.c.l.b16 %v475
        %v556 = vpack.c.b16 %v511, %v508
        %v557 = vpack.c.b16 %v512, %v509
        %v558 = vpack.c.b16 %v513, %v510
        %v559 = vpack.c.b16 %v517, %v514
        %v560 = vpack.c.b16 %v518, %v515
        %v561 = vpack.c.b16 %v519, %v516
        %v562 = vpack.c.b16 %v523, %v520
        %v563 = vpack.c.b16 %v524, %v521
        %v564 = vpack.c.b16 %v525, %v522
        %v565 = vpack.c.b16 %v529, %v526
        %v566 = vpack.c.b16 %v530, %v527
        %v567 = vpack.c.b16 %v531, %v528
        %v568 = vpack.c.b16 %v535, %v532
        %v569 = vpack.c.b16 %v536, %v533
        %v570 = vpack.c.b16 %v537, %v534
        %v571 = vpack.c.b16 %v541, %v538
        %v572 = vpack.c.b16 %v542, %v539
        %v573 = vpack.c.b16 %v543, %v540
        %v574 = vpack.c.b16 %v547, %v544
        %v575 = vpack.c.b16 %v548, %v545
        %v576 = vpack.c.b16 %v549, %v546
        %v577 = vpack.c.b16 %v553, %v550
        %v578 = vpack.c.b16 %v554, %v551
        %v579 = vpack.c.b16 %v555, %v552
        %604 = vmatprep.subr.bf16.mxu0 %v578
        %605 = vmatpush1.bf16.msra.mxu0 %v577
        %606 = vmatprep.subr.bf16.mxu0 %v575
        %607 = vmatpush1.bf16.msra.mxu0 %v574
        %608 = vmatprep.subr.bf16.mxu0 %v572
        %609 = vmatpush1.bf16.msra.mxu0 %v571
        %610 = vmatprep.subr.bf16.mxu0 %v569
        %611 = vmatpush1.bf16.msra.mxu0 %v568
        %612 = vmatprep.subr.bf16.mxu0 %v566
        %613 = vmatpush1.bf16.msra.mxu0 %v565
        %614 = vmatprep.subr.bf16.mxu0 %v563
        %615 = vmatpush1.bf16.msra.mxu0 %v562
        %616 = vmatprep.subr.bf16.mxu0 %v560
        %617 = vmatpush1.bf16.msra.mxu0 %v559
        %618 = vmatprep.subr.bf16.mxu0 %v557
        %619 = vmatpush1.bf16.msra.mxu0 %v556
        %620 = vmatprep.subr.bf16.mxu0 0
        %621 = vmatpush2.bf16.msra.mxu0 0
        %622 = vmatprep.subr.bf16.mxu0 0
        %623 = vmatpush2.bf16.msra.mxu0 0
        %624 = vmatprep.subr.bf16.mxu0 0
        %625 = vmatpush2.bf16.msra.mxu0 0
        %626 = vmatprep.subr.bf16.mxu0 0
        %627 = vmatpush2.bf16.msra.mxu0 0
        %628 = vmatprep.subr.bf16.mxu0 0
        %629 = vmatpush2.bf16.msra.mxu0 0
        %630 = vmatprep.subr.bf16.mxu0 0
        %631 = vmatpush2.bf16.msra.mxu0 0
        %632 = vmatprep.subr.bf16.mxu0 0
        %633 = vmatpush2.bf16.msra.mxu0 0
        %634 = vmatprep.subr.bf16.mxu0 0
        %635 = vmatpush2.bf16.msra.mxu0 0
        %636 = vmatprep.mubr.bf16.mxu0 0
        %637 = vmatmul.mubr.bf16.gmra.mxu0 %v443
        %v638 = vpop.f32.mrf.mxu0
        %v639 = vadd.f32 0.0, %v638
        %v640 = vpop.f32.mrf.mxu0
        %v641 = vadd.f32 0.0, %v640
        %v642 = vpop.f32.mrf.mxu0
        %v643 = vadd.f32 0.0, %v642
        %v644 = vpop.f32.mrf.mxu0
        %v645 = vadd.f32 0.0, %v644
        %646 = vdwg.mxu0
        %647 = vmatprep.subr.bf16.mxu0 0
        %648 = vmatpush1.bf16.msra.mxu0 %v579
        %649 = vmatprep.subr.bf16.mxu0 0
        %650 = vmatpush1.bf16.msra.mxu0 %v576
        %651 = vmatprep.subr.bf16.mxu0 0
        %652 = vmatpush1.bf16.msra.mxu0 %v573
        %653 = vmatprep.subr.bf16.mxu0 0
        %654 = vmatpush1.bf16.msra.mxu0 %v570
        %655 = vmatprep.subr.bf16.mxu0 0
        %656 = vmatpush1.bf16.msra.mxu0 %v567
        %657 = vmatprep.subr.bf16.mxu0 0
        %658 = vmatpush1.bf16.msra.mxu0 %v564
        %659 = vmatprep.subr.bf16.mxu0 0
        %660 = vmatpush1.bf16.msra.mxu0 %v561
        %661 = vmatprep.subr.bf16.mxu0 0
        %662 = vmatpush1.bf16.msra.mxu0 %v558
        %663 = vmatprep.subr.bf16.mxu0 0
        %664 = vmatpush2.bf16.msra.mxu0 0
        %665 = vmatprep.subr.bf16.mxu0 0
        %666 = vmatpush2.bf16.msra.mxu0 0
        %667 = vmatprep.subr.bf16.mxu0 0
        %668 = vmatpush2.bf16.msra.mxu0 0
        %669 = vmatprep.subr.bf16.mxu0 0
        %670 = vmatpush2.bf16.msra.mxu0 0
        %671 = vmatprep.subr.bf16.mxu0 0
        %672 = vmatpush2.bf16.msra.mxu0 0
        %673 = vmatprep.subr.bf16.mxu0 0
        %674 = vmatpush2.bf16.msra.mxu0 0
        %675 = vmatprep.subr.bf16.mxu0 0
        %676 = vmatpush2.bf16.msra.mxu0 0
        %677 = vmatprep.subr.bf16.mxu0 0
        %678 = vmatpush2.bf16.msra.mxu0 0
        %679 = vmatprep.mubr.bf16.mxu0 0
        %680 = vmatmul.mubr.bf16.gmra.mxu0 %v443
        %v681 = vpop.f32.mrf.mxu0
        %v682 = vadd.f32 0.0, %v681
        %v683 = vpop.f32.mrf.mxu0
        %v684 = vpop.f32.mrf.mxu0
        %v685 = vadd.f32 0.0, %v684
        %v686 = vpop.f32.mrf.mxu0
        %687 = vdwg.mxu0
        %v688 = vlaneseq
        %v689 = vshrl.u32 %v688, 7
        %v690 = vsub.s32 0, %v689
        %v691 = vrot.slane %v439, %v690
        %v692 = vadd.f32 %v639, %v691
        %v693 = vadd.f32 %v643, %v691
        %v694 = vlaneseq
        %v695 = vshrl.u32 %v694, 7
        %v696 = vsub.s32 1, %v695
        %v697 = vrot.slane %v439, %v696
        %v698 = vadd.f32 %v641, %v697
        %v699 = vadd.f32 %v645, %v697
        %v700 = vlaneseq
        %v701 = vshrl.u32 %v700, 7
        %v702 = vsub.s32 2, %v701
        %v703 = vrot.slane %v439, %v702
        %v704 = vadd.f32 %v682, %v703
        %v705 = vadd.f32 %v685, %v703
        %v706 = vpack.c.bf16 %v699, %v698
        %v707 = vld [vmem:[%s1] sm:$0xff]
        %v708 = vld [vmem:[%s1 + $0x8] sm:$0xff]
        %v709 = vlaneseq
        %v710 = vand.u32 %v709, 127
        %vm711 = vcmp.ge.s32.totalorder %v710, 0
        %vm712 = vcmp.lt.s32.totalorder %v710, 16
        %vm713 = vmand %vm711, %vm712
        %v714 = vsel %vm713, 0.25, 0.0
        %v715 = vmul.f32 %v692, %v714
        %v716 = vmul.f32 %v693, %v714
        %v717 = vpack.c.bf16 %v716, %v715
        %718 = vmatprep.subr.bf16.mxu0 0
        %719 = vmatpush1.bf16.xpose.msra.mxu0 0
        %720 = vmatprep.subr.bf16.mxu0 0
        %721 = vmatpush1.bf16.xpose.msra.mxu0 0
        %722 = vmatprep.subr.bf16.mxu0 0
        %723 = vmatpush1.bf16.xpose.msra.mxu0 0
        %724 = vmatprep.subr.bf16.mxu0 0
        %725 = vmatpush1.bf16.xpose.msra.mxu0 0
        %726 = vmatprep.subr.bf16.mxu0 0
        %727 = vmatpush1.bf16.xpose.msra.mxu0 0
        %728 = vmatprep.subr.bf16.mxu0 0
        %729 = vmatpush1.bf16.xpose.msra.mxu0 0
        %730 = vmatprep.subr.bf16.mxu0 0
        %731 = vmatpush1.bf16.xpose.msra.mxu0 0
        %732 = vmatprep.subr.bf16.mxu0 0
        %733 = vmatpush1.bf16.xpose.msra.mxu0 %v706
        %734 = vmatprep.subr.bf16.mxu0 0
        %735 = vmatpush2.bf16.xpose.msra.mxu0 0
        %736 = vmatprep.subr.bf16.mxu0 0
        %737 = vmatpush2.bf16.xpose.msra.mxu0 0
        %738 = vmatprep.subr.bf16.mxu0 0
        %739 = vmatpush2.bf16.xpose.msra.mxu0 0
        %740 = vmatprep.subr.bf16.mxu0 0
        %741 = vmatpush2.bf16.xpose.msra.mxu0 0
        %742 = vmatprep.subr.bf16.mxu0 0
        %743 = vmatpush2.bf16.xpose.msra.mxu0 0
        %744 = vmatprep.subr.bf16.mxu0 0
        %745 = vmatpush2.bf16.xpose.msra.mxu0 0
        %746 = vmatprep.subr.bf16.mxu0 0
        %747 = vmatpush2.bf16.xpose.msra.mxu0 0
        %748 = vmatprep.subr.bf16.mxu0 0
        %749 = vmatpush2.bf16.xpose.msra.mxu0 0
        %750 = vmatprep.mubr.bf16.mxu0 0
        %751 = vmatmul.mubr.bf16.gmra.mxu0 %v717
        %v752 = vpop.f32.mrf.mxu0
        %v753 = vadd.f32 %v707, %v752
        %v754 = vpop.f32.mrf.mxu0
        %v755 = vpop.f32.mrf.mxu0
        %v756 = vadd.f32 %v708, %v755
        %v757 = vpop.f32.mrf.mxu0
        %758 = vdwg.mxu0
        %vm759 = vcmask 130048
        %v760 = vsel %vm759, %v753, -inf
        %761 = vmax.xlane.f32.xlu0 %v760
        %v762 = vpop.xlane.xlu0 %761
        %v763 = vsel %vm759, %v756, -inf
        %764 = vmax.xlane.f32.xlu0 %v763
        %v765 = vpop.xlane.xlu0 %764
        %v766 = vsub.f32 %v753, %v762
        %v767 = vsub.f32 %v756, %v765
        %v768 = vmul.f32 %v766, 1.442695
        %v769 = vpow.pop %v768
        %v770 = vmul.f32 %v767, 1.442695
        %v771 = vpow.pop %v770
        %v772 = vsel %vm759, %v769, 0.0
        %773 = vadd.xlane.f32.xlu0 %v772
        %v774 = vpop.xlane.xlu0 %773
        %v775 = vsel %vm759, %v771, 0.0
        %776 = vadd.xlane.f32.xlu0 %v775
        %v777 = vpop.xlane.xlu0 %776
        %v778 = vrcp.pop %v774
        %v779 = vrcp.pop %v777
        %v780 = vmul.f32 %v769, %v778
        %v781 = vmul.f32 %v771, %v779
        %v782 = vsel %vm713, 1.0, 0.0
        %v783 = vmul.f32 %v704, %v782
        %v784 = vmul.f32 %v705, %v782
        %v785 = vpack.c.bf16 %v784, %v783
        %v786 = vpack.c.bf16 %v781, %v780
        %vm787 = vcmp.ge.s32.totalorder %v710, 16
        %vm788 = vcmp.lt.s32.totalorder %v710, 32
        %vm789 = vmand %vm787, %vm788
        %v790 = vsel %vm789, 0.25, 0.0
        %v791 = vmul.f32 %v692, %v790
        %v792 = vmul.f32 %v693, %v790
        %v793 = vpack.c.bf16 %v792, %v791
        %794 = vmatprep.subr.bf16.mxu0 0
        %795 = vmatpush1.bf16.xpose.msra.mxu0 0
        %796 = vmatprep.subr.bf16.mxu0 0
        %797 = vmatpush1.bf16.xpose.msra.mxu0 0
        %798 = vmatprep.subr.bf16.mxu0 0
        %799 = vmatpush1.bf16.xpose.msra.mxu0 0
        %800 = vmatprep.subr.bf16.mxu0 0
        %801 = vmatpush1.bf16.xpose.msra.mxu0 0
        %802 = vmatprep.subr.bf16.mxu0 0
        %803 = vmatpush1.bf16.xpose.msra.mxu0 0
        %804 = vmatprep.subr.bf16.mxu0 0
        %805 = vmatpush1.bf16.xpose.msra.mxu0 0
        %806 = vmatprep.subr.bf16.mxu0 0
        %807 = vmatpush1.bf16.xpose.msra.mxu0 0
        %808 = vmatprep.subr.bf16.mxu0 0
        %809 = vmatpush1.bf16.xpose.msra.mxu0 %v706
        %810 = vmatprep.subr.bf16.mxu0 0
        %811 = vmatpush2.bf16.xpose.msra.mxu0 0
        %812 = vmatprep.subr.bf16.mxu0 0
        %813 = vmatpush2.bf16.xpose.msra.mxu0 0
        %814 = vmatprep.subr.bf16.mxu0 0
        %815 = vmatpush2.bf16.xpose.msra.mxu0 0
        %816 = vmatprep.subr.bf16.mxu0 0
        %817 = vmatpush2.bf16.xpose.msra.mxu0 0
        %818 = vmatprep.subr.bf16.mxu0 0
        %819 = vmatpush2.bf16.xpose.msra.mxu0 0
        %820 = vmatprep.subr.bf16.mxu0 0
        %821 = vmatpush2.bf16.xpose.msra.mxu0 0
        %822 = vmatprep.subr.bf16.mxu0 0
        %823 = vmatpush2.bf16.xpose.msra.mxu0 0
        %824 = vmatprep.subr.bf16.mxu0 0
        %825 = vmatpush2.bf16.xpose.msra.mxu0 0
        %826 = vmatprep.mubr.bf16.mxu0 0
        %827 = vmatmul.mubr.bf16.gmra.mxu0 %v793
        %v828 = vpop.f32.mrf.mxu0
        %v829 = vadd.f32 %v707, %v828
        %v830 = vpop.f32.mrf.mxu0
        %v831 = vpop.f32.mrf.mxu0
        %v832 = vadd.f32 %v708, %v831
        %v833 = vpop.f32.mrf.mxu0
        %834 = vdwg.mxu0
        %v835 = vsel %vm759, %v829, -inf
        %836 = vmax.xlane.f32.xlu0 %v835
        %v837 = vpop.xlane.xlu0 %836
        %v838 = vsel %vm759, %v832, -inf
        %839 = vmax.xlane.f32.xlu0 %v838
        %v840 = vpop.xlane.xlu0 %839
        %v841 = vsub.f32 %v829, %v837
        %v842 = vsub.f32 %v832, %v840
        %v843 = vmul.f32 %v841, 1.442695
        %v844 = vpow.pop %v843
        %v845 = vmul.f32 %v842, 1.442695
        %v846 = vpow.pop %v845
        %v847 = vsel %vm759, %v844, 0.0
        %848 = vadd.xlane.f32.xlu0 %v847
        %v849 = vpop.xlane.xlu0 %848
        %v850 = vsel %vm759, %v846, 0.0
        %851 = vadd.xlane.f32.xlu0 %v850
        %v852 = vpop.xlane.xlu0 %851
        %v853 = vrcp.pop %v849
        %v854 = vrcp.pop %v852
        %v855 = vmul.f32 %v844, %v853
        %v856 = vmul.f32 %v846, %v854
        %v857 = vsel %vm789, 1.0, 0.0
        %v858 = vmul.f32 %v704, %v857
        %v859 = vmul.f32 %v705, %v857
        %v860 = vpack.c.bf16 %v859, %v858
        %v861 = vpack.c.bf16 %v856, %v855
        %v863 = vsel %vm759, %v861, 0
        %865 = vmatprep.subr.bf16.mxu0 0
        %866 = vmatpush1.bf16.msra.mxu0 0
        %867 = vmatprep.subr.bf16.mxu0 0
        %868 = vmatpush1.bf16.msra.mxu0 0
        %869 = vmatprep.subr.bf16.mxu0 0
        %870 = vmatpush1.bf16.msra.mxu0 0
        %871 = vmatprep.subr.bf16.mxu0 0
        %872 = vmatpush1.bf16.msra.mxu0 0
        %873 = vmatprep.subr.bf16.mxu0 0
        %874 = vmatpush1.bf16.msra.mxu0 0
        %875 = vmatprep.subr.bf16.mxu0 0
        %876 = vmatpush1.bf16.msra.mxu0 0
        %877 = vmatprep.subr.bf16.mxu0 0
        %878 = vmatpush1.bf16.msra.mxu0 0
        %879 = vmatprep.subr.bf16.mxu0 0
        %880 = vmatpush1.bf16.msra.mxu0 %v860
        %881 = vmatprep.subr.bf16.mxu0 0
        %882 = vmatpush2.bf16.msra.mxu0 0
        %883 = vmatprep.subr.bf16.mxu0 0
        %884 = vmatpush2.bf16.msra.mxu0 0
        %885 = vmatprep.subr.bf16.mxu0 0
        %886 = vmatpush2.bf16.msra.mxu0 0
        %887 = vmatprep.subr.bf16.mxu0 0
        %888 = vmatpush2.bf16.msra.mxu0 0
        %889 = vmatprep.subr.bf16.mxu0 0
        %890 = vmatpush2.bf16.msra.mxu0 0
        %891 = vmatprep.subr.bf16.mxu0 0
        %892 = vmatpush2.bf16.msra.mxu0 0
        %893 = vmatprep.subr.bf16.mxu0 0
        %894 = vmatpush2.bf16.msra.mxu0 0
        %895 = vmatprep.subr.bf16.mxu0 0
        %896 = vmatpush2.bf16.msra.mxu0 0
        %897 = vmatprep.mubr.bf16.mxu0 0
        %898 = vmatmul.mubr.bf16.gmra.mxu0 %v863
        %v899 = vpop.f32.mrf.mxu0
        %v900 = vadd.f32 0.0, %v899
        %v901 = vpop.f32.mrf.mxu0
        %v902 = vpop.f32.mrf.mxu0
        %v903 = vadd.f32 0.0, %v902
        %v904 = vpop.f32.mrf.mxu0
        %905 = vdwg.mxu0
        %v907 = vsel %vm759, %v786, 0
        %909 = vmatprep.subr.bf16.mxu0 0
        %910 = vmatpush1.bf16.msra.mxu0 0
        %911 = vmatprep.subr.bf16.mxu0 0
        %912 = vmatpush1.bf16.msra.mxu0 0
        %913 = vmatprep.subr.bf16.mxu0 0
        %914 = vmatpush1.bf16.msra.mxu0 0
        %915 = vmatprep.subr.bf16.mxu0 0
        %916 = vmatpush1.bf16.msra.mxu0 0
        %917 = vmatprep.subr.bf16.mxu0 0
        %918 = vmatpush1.bf16.msra.mxu0 0
        %919 = vmatprep.subr.bf16.mxu0 0
        %920 = vmatpush1.bf16.msra.mxu0 0
        %921 = vmatprep.subr.bf16.mxu0 0
        %922 = vmatpush1.bf16.msra.mxu0 0
        %923 = vmatprep.subr.bf16.mxu0 0
        %924 = vmatpush1.bf16.msra.mxu0 %v785
        %925 = vmatprep.subr.bf16.mxu0 0
        %926 = vmatpush2.bf16.msra.mxu0 0
        %927 = vmatprep.subr.bf16.mxu0 0
        %928 = vmatpush2.bf16.msra.mxu0 0
        %929 = vmatprep.subr.bf16.mxu0 0
        %930 = vmatpush2.bf16.msra.mxu0 0
        %931 = vmatprep.subr.bf16.mxu0 0
        %932 = vmatpush2.bf16.msra.mxu0 0
        %933 = vmatprep.subr.bf16.mxu0 0
        %934 = vmatpush2.bf16.msra.mxu0 0
        %935 = vmatprep.subr.bf16.mxu0 0
        %936 = vmatpush2.bf16.msra.mxu0 0
        %937 = vmatprep.subr.bf16.mxu0 0
        %938 = vmatpush2.bf16.msra.mxu0 0
        %939 = vmatprep.subr.bf16.mxu0 0
        %940 = vmatpush2.bf16.msra.mxu0 0
        %941 = vmatprep.mubr.bf16.mxu0 0
        %942 = vmatmul.mubr.bf16.gmra.mxu0 %v907
        %v943 = vpop.f32.mrf.mxu0
        %v944 = vadd.f32 %v900, %v943
        %v945 = vpop.f32.mrf.mxu0
        %v946 = vpop.f32.mrf.mxu0
        %v947 = vadd.f32 %v903, %v946
        %v948 = vpop.f32.mrf.mxu0
        %949 = vdwg.mxu0
        %vm950 = vcmp.ge.s32.totalorder %v710, 32
        %vm951 = vcmp.lt.s32.totalorder %v710, 48
        %vm952 = vmand %vm950, %vm951
        %v953 = vsel %vm952, 0.25, 0.0
        %v954 = vmul.f32 %v692, %v953
        %v955 = vmul.f32 %v693, %v953
        %v956 = vpack.c.bf16 %v955, %v954
        %957 = vmatprep.subr.bf16.mxu0 0
        %958 = vmatpush1.bf16.xpose.msra.mxu0 0
        %959 = vmatprep.subr.bf16.mxu0 0
        %960 = vmatpush1.bf16.xpose.msra.mxu0 0
        %961 = vmatprep.subr.bf16.mxu0 0
        %962 = vmatpush1.bf16.xpose.msra.mxu0 0
        %963 = vmatprep.subr.bf16.mxu0 0
        %964 = vmatpush1.bf16.xpose.msra.mxu0 0
        %965 = vmatprep.subr.bf16.mxu0 0
        %966 = vmatpush1.bf16.xpose.msra.mxu0 0
        %967 = vmatprep.subr.bf16.mxu0 0
        %968 = vmatpush1.bf16.xpose.msra.mxu0 0
        %969 = vmatprep.subr.bf16.mxu0 0
        %970 = vmatpush1.bf16.xpose.msra.mxu0 0
        %971 = vmatprep.subr.bf16.mxu0 0
        %972 = vmatpush1.bf16.xpose.msra.mxu0 %v706
        %973 = vmatprep.subr.bf16.mxu0 0
        %974 = vmatpush2.bf16.xpose.msra.mxu0 0
        %975 = vmatprep.subr.bf16.mxu0 0
        %976 = vmatpush2.bf16.xpose.msra.mxu0 0
        %977 = vmatprep.subr.bf16.mxu0 0
        %978 = vmatpush2.bf16.xpose.msra.mxu0 0
        %979 = vmatprep.subr.bf16.mxu0 0
        %980 = vmatpush2.bf16.xpose.msra.mxu0 0
        %981 = vmatprep.subr.bf16.mxu0 0
        %982 = vmatpush2.bf16.xpose.msra.mxu0 0
        %983 = vmatprep.subr.bf16.mxu0 0
        %984 = vmatpush2.bf16.xpose.msra.mxu0 0
        %985 = vmatprep.subr.bf16.mxu0 0
        %986 = vmatpush2.bf16.xpose.msra.mxu0 0
        %987 = vmatprep.subr.bf16.mxu0 0
        %988 = vmatpush2.bf16.xpose.msra.mxu0 0
        %989 = vmatprep.mubr.bf16.mxu0 0
        %990 = vmatmul.mubr.bf16.gmra.mxu0 %v956
        %v991 = vpop.f32.mrf.mxu0
        %v992 = vadd.f32 %v707, %v991
        %v993 = vpop.f32.mrf.mxu0
        %v994 = vpop.f32.mrf.mxu0
        %v995 = vadd.f32 %v708, %v994
        %v996 = vpop.f32.mrf.mxu0
        %997 = vdwg.mxu0
        %v998 = vsel %vm759, %v992, -inf
        %999 = vmax.xlane.f32.xlu0 %v998
        %v1000 = vpop.xlane.xlu0 %999
        %v1001 = vsel %vm759, %v995, -inf
        %1002 = vmax.xlane.f32.xlu0 %v1001
        %v1003 = vpop.xlane.xlu0 %1002
        %v1004 = vsub.f32 %v992, %v1000
        %v1005 = vsub.f32 %v995, %v1003
        %v1006 = vmul.f32 %v1004, 1.442695
        %v1007 = vpow.pop %v1006
        %v1008 = vmul.f32 %v1005, 1.442695
        %v1009 = vpow.pop %v1008
        %v1010 = vsel %vm759, %v1007, 0.0
        %1011 = vadd.xlane.f32.xlu0 %v1010
        %v1012 = vpop.xlane.xlu0 %1011
        %v1013 = vsel %vm759, %v1009, 0.0
        %1014 = vadd.xlane.f32.xlu0 %v1013
        %v1015 = vpop.xlane.xlu0 %1014
        %v1016 = vrcp.pop %v1012
        %v1017 = vrcp.pop %v1015
        %v1018 = vmul.f32 %v1007, %v1016
        %v1019 = vmul.f32 %v1009, %v1017
        %v1020 = vsel %vm952, 1.0, 0.0
        %v1021 = vmul.f32 %v704, %v1020
        %v1022 = vmul.f32 %v705, %v1020
        %v1023 = vpack.c.bf16 %v1022, %v1021
        %v1024 = vpack.c.bf16 %v1019, %v1018
        %v1026 = vsel %vm759, %v1024, 0
        %1028 = vmatprep.subr.bf16.mxu0 0
        %1029 = vmatpush1.bf16.msra.mxu0 0
        %1030 = vmatprep.subr.bf16.mxu0 0
        %1031 = vmatpush1.bf16.msra.mxu0 0
        %1032 = vmatprep.subr.bf16.mxu0 0
        %1033 = vmatpush1.bf16.msra.mxu0 0
        %1034 = vmatprep.subr.bf16.mxu0 0
        %1035 = vmatpush1.bf16.msra.mxu0 0
        %1036 = vmatprep.subr.bf16.mxu0 0
        %1037 = vmatpush1.bf16.msra.mxu0 0
        %1038 = vmatprep.subr.bf16.mxu0 0
        %1039 = vmatpush1.bf16.msra.mxu0 0
        %1040 = vmatprep.subr.bf16.mxu0 0
        %1041 = vmatpush1.bf16.msra.mxu0 0
        %1042 = vmatprep.subr.bf16.mxu0 0
        %1043 = vmatpush1.bf16.msra.mxu0 %v1023
        %1044 = vmatprep.subr.bf16.mxu0 0
        %1045 = vmatpush2.bf16.msra.mxu0 0
        %1046 = vmatprep.subr.bf16.mxu0 0
        %1047 = vmatpush2.bf16.msra.mxu0 0
        %1048 = vmatprep.subr.bf16.mxu0 0
        %1049 = vmatpush2.bf16.msra.mxu0 0
        %1050 = vmatprep.subr.bf16.mxu0 0
        %1051 = vmatpush2.bf16.msra.mxu0 0
        %1052 = vmatprep.subr.bf16.mxu0 0
        %1053 = vmatpush2.bf16.msra.mxu0 0
        %1054 = vmatprep.subr.bf16.mxu0 0
        %1055 = vmatpush2.bf16.msra.mxu0 0
        %1056 = vmatprep.subr.bf16.mxu0 0
        %1057 = vmatpush2.bf16.msra.mxu0 0
        %1058 = vmatprep.subr.bf16.mxu0 0
        %1059 = vmatpush2.bf16.msra.mxu0 0
        %1060 = vmatprep.mubr.bf16.mxu0 0
        %1061 = vmatmul.mubr.bf16.gmra.mxu0 %v1026
        %v1062 = vpop.f32.mrf.mxu0
        %v1063 = vadd.f32 0.0, %v1062
        %v1064 = vpop.f32.mrf.mxu0
        %v1065 = vpop.f32.mrf.mxu0
        %v1066 = vadd.f32 0.0, %v1065
        %v1067 = vpop.f32.mrf.mxu0
        %1068 = vdwg.mxu0
        %v1069 = vadd.f32 %v944, %v1063
        %v1070 = vadd.f32 %v947, %v1066
        %vm1071 = vcmp.ge.s32.totalorder %v710, 48
        %vm1072 = vcmp.lt.s32.totalorder %v710, 64
        %vm1073 = vmand %vm1071, %vm1072
        %v1074 = vsel %vm1073, 0.25, 0.0
        %v1075 = vmul.f32 %v692, %v1074
        %v1076 = vmul.f32 %v693, %v1074
        %v1077 = vpack.c.bf16 %v1076, %v1075
        %1078 = vmatprep.subr.bf16.mxu0 0
        %1079 = vmatpush1.bf16.xpose.msra.mxu0 0
        %1080 = vmatprep.subr.bf16.mxu0 0
        %1081 = vmatpush1.bf16.xpose.msra.mxu0 0
        %1082 = vmatprep.subr.bf16.mxu0 0
        %1083 = vmatpush1.bf16.xpose.msra.mxu0 0
        %1084 = vmatprep.subr.bf16.mxu0 0
        %1085 = vmatpush1.bf16.xpose.msra.mxu0 0
        %1086 = vmatprep.subr.bf16.mxu0 0
        %1087 = vmatpush1.bf16.xpose.msra.mxu0 0
        %1088 = vmatprep.subr.bf16.mxu0 0
        %1089 = vmatpush1.bf16.xpose.msra.mxu0 0
        %1090 = vmatprep.subr.bf16.mxu0 0
        %1091 = vmatpush1.bf16.xpose.msra.mxu0 0
        %1092 = vmatprep.subr.bf16.mxu0 0
        %1093 = vmatpush1.bf16.xpose.msra.mxu0 %v706
        %1094 = vmatprep.subr.bf16.mxu0 0
        %1095 = vmatpush2.bf16.xpose.msra.mxu0 0
        %1096 = vmatprep.subr.bf16.mxu0 0
        %1097 = vmatpush2.bf16.xpose.msra.mxu0 0
        %1098 = vmatprep.subr.bf16.mxu0 0
        %1099 = vmatpush2.bf16.xpose.msra.mxu0 0
        %1100 = vmatprep.subr.bf16.mxu0 0
        %1101 = vmatpush2.bf16.xpose.msra.mxu0 0
        %1102 = vmatprep.subr.bf16.mxu0 0
        %1103 = vmatpush2.bf16.xpose.msra.mxu0 0
        %1104 = vmatprep.subr.bf16.mxu0 0
        %1105 = vmatpush2.bf16.xpose.msra.mxu0 0
        %1106 = vmatprep.subr.bf16.mxu0 0
        %1107 = vmatpush2.bf16.xpose.msra.mxu0 0
        %1108 = vmatprep.subr.bf16.mxu0 0
        %1109 = vmatpush2.bf16.xpose.msra.mxu0 0
        %1110 = vmatprep.mubr.bf16.mxu0 0
        %1111 = vmatmul.mubr.bf16.gmra.mxu0 %v1077
        %v1112 = vpop.f32.mrf.mxu0
        %v1113 = vadd.f32 %v707, %v1112
        %v1114 = vpop.f32.mrf.mxu0
        %v1115 = vpop.f32.mrf.mxu0
        %v1116 = vadd.f32 %v708, %v1115
        %v1117 = vpop.f32.mrf.mxu0
        %1118 = vdwg.mxu0
        %v1119 = vsel %vm759, %v1113, -inf
        %1120 = vmax.xlane.f32.xlu0 %v1119
        %v1121 = vpop.xlane.xlu0 %1120
        %v1122 = vsel %vm759, %v1116, -inf
        %1123 = vmax.xlane.f32.xlu0 %v1122
        %v1124 = vpop.xlane.xlu0 %1123
        %v1125 = vsub.f32 %v1113, %v1121
        %v1126 = vsub.f32 %v1116, %v1124
        %v1127 = vmul.f32 %v1125, 1.442695
        %v1128 = vpow.pop %v1127
        %v1129 = vmul.f32 %v1126, 1.442695
        %v1130 = vpow.pop %v1129
        %v1131 = vsel %vm759, %v1128, 0.0
        %1132 = vadd.xlane.f32.xlu0 %v1131
        %v1133 = vpop.xlane.xlu0 %1132
        %v1134 = vsel %vm759, %v1130, 0.0
        %1135 = vadd.xlane.f32.xlu0 %v1134
        %v1136 = vpop.xlane.xlu0 %1135
        %v1137 = vrcp.pop %v1133
        %v1138 = vrcp.pop %v1136
        %v1139 = vmul.f32 %v1128, %v1137
        %v1140 = vmul.f32 %v1130, %v1138
        %v1141 = vsel %vm1073, 1.0, 0.0
        %v1142 = vmul.f32 %v704, %v1141
        %v1143 = vmul.f32 %v705, %v1141
        %v1144 = vpack.c.bf16 %v1143, %v1142
        %v1145 = vpack.c.bf16 %v1140, %v1139
        %v1147 = vsel %vm759, %v1145, 0
        %1149 = vmatprep.subr.bf16.mxu0 0
        %1150 = vmatpush1.bf16.msra.mxu0 0
        %1151 = vmatprep.subr.bf16.mxu0 0
        %1152 = vmatpush1.bf16.msra.mxu0 0
        %1153 = vmatprep.subr.bf16.mxu0 0
        %1154 = vmatpush1.bf16.msra.mxu0 0
        %1155 = vmatprep.subr.bf16.mxu0 0
        %1156 = vmatpush1.bf16.msra.mxu0 0
        %1157 = vmatprep.subr.bf16.mxu0 0
        %1158 = vmatpush1.bf16.msra.mxu0 0
        %1159 = vmatprep.subr.bf16.mxu0 0
        %1160 = vmatpush1.bf16.msra.mxu0 0
        %1161 = vmatprep.subr.bf16.mxu0 0
        %1162 = vmatpush1.bf16.msra.mxu0 0
        %1163 = vmatprep.subr.bf16.mxu0 0
        %1164 = vmatpush1.bf16.msra.mxu0 %v1144
        %1165 = vmatprep.subr.bf16.mxu0 0
        %1166 = vmatpush2.bf16.msra.mxu0 0
        %1167 = vmatprep.subr.bf16.mxu0 0
        %1168 = vmatpush2.bf16.msra.mxu0 0
        %1169 = vmatprep.subr.bf16.mxu0 0
        %1170 = vmatpush2.bf16.msra.mxu0 0
        %1171 = vmatprep.subr.bf16.mxu0 0
        %1172 = vmatpush2.bf16.msra.mxu0 0
        %1173 = vmatprep.subr.bf16.mxu0 0
        %1174 = vmatpush2.bf16.msra.mxu0 0
        %1175 = vmatprep.subr.bf16.mxu0 0
        %1176 = vmatpush2.bf16.msra.mxu0 0
        %1177 = vmatprep.subr.bf16.mxu0 0
        %1178 = vmatpush2.bf16.msra.mxu0 0
        %1179 = vmatprep.subr.bf16.mxu0 0
        %1180 = vmatpush2.bf16.msra.mxu0 0
        %1181 = vmatprep.mubr.bf16.mxu0 0
        %1182 = vmatmul.mubr.bf16.gmra.mxu0 %v1147
        %v1183 = vpop.f32.mrf.mxu0
        %v1184 = vadd.f32 0.0, %v1183
        %v1185 = vpop.f32.mrf.mxu0
        %v1186 = vpop.f32.mrf.mxu0
        %v1187 = vadd.f32 0.0, %v1186
        %v1188 = vpop.f32.mrf.mxu0
        %1189 = vdwg.mxu0
        %v1190 = vadd.f32 %v1069, %v1184
        %v1191 = vadd.f32 %v1070, %v1187
        %v1192 = vpack.c.bf16 %v1191, %v1190
        %v1193 = vld [vmem:[%s380] sm:$0xf]
        %v1194 = vld [vmem:[%s380 + $0x4] sm:$0xf]
        %v1195 = vld [vmem:[%s380 + $0x8] sm:$0xf]
        %v1196 = vld [vmem:[%s380 + $0xc] sm:$0xf]
        %v1197 = vld [vmem:[%s380 + $0x10] sm:$0xf]
        %v1198 = vld [vmem:[%s380 + $0x14] sm:$0xf]
        %v1199 = vld [vmem:[%s380 + $0x18] sm:$0xf]
        %v1200 = vld [vmem:[%s380 + $0x1c] sm:$0xf]
        %v1201 = vld [vmem:[%s380 + $0x20] sm:$0xf]
        %v1202 = vld [vmem:[%s380 + $0x24] sm:$0xf]
        %v1203 = vld [vmem:[%s380 + $0x28] sm:$0xf]
        %v1204 = vld [vmem:[%s380 + $0x2c] sm:$0xf]
        %v1205 = vld [vmem:[%s380 + $0x30] sm:$0xf]
        %v1206 = vld [vmem:[%s380 + $0x34] sm:$0xf]
        %v1207 = vld [vmem:[%s380 + $0x38] sm:$0xf]
        %v1208 = vld [vmem:[%s380 + $0x3c] sm:$0xf]
        %v1209 = vlaneseq
        %v1210 = vshrl.u32 %v1209, 7
        %v1211 = vsub.s32 3, %v1210
        %v1212 = vrot.slane %v439, %v1211
        %v1229 = vunpack.c.l.b16 %v1193
        %v1230 = vunpack.c.l.b16 %v1194
        %v1231 = vunpack.c.l.b16 %v1195
        %v1232 = vunpack.c.l.b16 %v1196
        %v1233 = vunpack.c.l.b16 %v1197
        %v1234 = vunpack.c.l.b16 %v1198
        %v1235 = vunpack.c.l.b16 %v1199
        %v1236 = vunpack.c.l.b16 %v1200
        %v1237 = vunpack.c.l.b16 %v1201
        %v1238 = vunpack.c.l.b16 %v1202
        %v1239 = vunpack.c.l.b16 %v1203
        %v1240 = vunpack.c.l.b16 %v1204
        %v1241 = vunpack.c.l.b16 %v1205
        %v1242 = vunpack.c.l.b16 %v1206
        %v1243 = vunpack.c.l.b16 %v1207
        %v1244 = vunpack.c.l.b16 %v1208
        %v1245 = vpack.c.b16 %v1230, %v1229
        %v1246 = vpack.c.b16 %v1232, %v1231
        %v1247 = vpack.c.b16 %v1234, %v1233
        %v1248 = vpack.c.b16 %v1236, %v1235
        %v1249 = vpack.c.b16 %v1238, %v1237
        %v1250 = vpack.c.b16 %v1240, %v1239
        %v1251 = vpack.c.b16 %v1242, %v1241
        %v1252 = vpack.c.b16 %v1244, %v1243
        %1261 = vmatprep.subr.bf16.mxu0 0
        %1262 = vmatpush1.bf16.msra.mxu0 %v1252
        %1263 = vmatprep.subr.bf16.mxu0 0
        %1264 = vmatpush1.bf16.msra.mxu0 %v1251
        %1265 = vmatprep.subr.bf16.mxu0 0
        %1266 = vmatpush1.bf16.msra.mxu0 %v1250
        %1267 = vmatprep.subr.bf16.mxu0 0
        %1268 = vmatpush1.bf16.msra.mxu0 %v1249
        %1269 = vmatprep.subr.bf16.mxu0 0
        %1270 = vmatpush1.bf16.msra.mxu0 %v1248
        %1271 = vmatprep.subr.bf16.mxu0 0
        %1272 = vmatpush1.bf16.msra.mxu0 %v1247
        %1273 = vmatprep.subr.bf16.mxu0 0
        %1274 = vmatpush1.bf16.msra.mxu0 %v1246
        %1275 = vmatprep.subr.bf16.mxu0 0
        %1276 = vmatpush1.bf16.msra.mxu0 %v1245
        %1277 = vmatprep.subr.bf16.mxu0 0
        %1278 = vmatpush2.bf16.msra.mxu0 0
        %1279 = vmatprep.subr.bf16.mxu0 0
        %1280 = vmatpush2.bf16.msra.mxu0 0
        %1281 = vmatprep.subr.bf16.mxu0 0
        %1282 = vmatpush2.bf16.msra.mxu0 0
        %1283 = vmatprep.subr.bf16.mxu0 0
        %1284 = vmatpush2.bf16.msra.mxu0 0
        %1285 = vmatprep.subr.bf16.mxu0 0
        %1286 = vmatpush2.bf16.msra.mxu0 0
        %1287 = vmatprep.subr.bf16.mxu0 0
        %1288 = vmatpush2.bf16.msra.mxu0 0
        %1289 = vmatprep.subr.bf16.mxu0 0
        %1290 = vmatpush2.bf16.msra.mxu0 0
        %1291 = vmatprep.subr.bf16.mxu0 0
        %1292 = vmatpush2.bf16.msra.mxu0 0
        %1293 = vmatprep.mubr.bf16.mxu0 0
        %1294 = vmatmul.mubr.bf16.gmra.mxu0 %v1192
        %v1295 = vpop.f32.mrf.mxu0
        %v1296 = vadd.f32 %v1212, %v1295
        %v1297 = vpop.f32.mrf.mxu0
        %v1298 = vpop.f32.mrf.mxu0
        %v1299 = vadd.f32 %v1212, %v1298
        %v1300 = vpop.f32.mrf.mxu0
        %1301 = vdwg.mxu0
        %v1302 = vadd.f32 %v441, %v1296
        %v1303 = vadd.f32 %v442, %v1299
        %1304 = vadd.xlane.f32.xlu0 %v1302
        %v1305 = vpop.xlane.xlu0 %1304
        %1306 = vadd.xlane.f32.xlu0 %v1303
        %v1307 = vpop.xlane.xlu0 %1306
        %v1308 = vmul.f32 %v1305, 0.015625
        %v1309 = vmul.f32 %v1307, 0.015625
        %v1310 = vmul.f32 %v1302, %v1302
        %v1311 = vmul.f32 %v1303, %v1303
        %1312 = vadd.xlane.f32.xlu0 %v1310
        %v1313 = vpop.xlane.xlu0 %1312
        %1314 = vadd.xlane.f32.xlu0 %v1311
        %v1315 = vpop.xlane.xlu0 %1314
        %v1316 = vmul.f32 %v1313, 0.015625
        %v1317 = vmul.f32 %v1315, 0.015625
        %v1318 = vmul.f32 %v1308, %v1308
        %v1319 = vmul.f32 %v1309, %v1309
        %v1320 = vsub.f32 %v1316, %v1318
        %v1321 = vsub.f32 %v1317, %v1319
        %v1322 = vadd.f32 %v1320, 1e-05
        %v1323 = vadd.f32 %v1321, 1e-05
        %v1324 = vrsqrt.pop %v1322
        %v1325 = vrsqrt.pop %v1323
        %v1326 = vsub.f32 %v1302, %v1308
        %v1327 = vsub.f32 %v1303, %v1309
        %v1328 = vmul.f32 %v1326, %v1324
        %v1329 = vmul.f32 %v1327, %v1325
        %v1330 = vlaneseq
        %v1331 = vshrl.u32 %v1330, 7
        %v1332 = vsub.s32 6, %v1331
        %v1333 = vrot.slane %v439, %v1332
        %v1334 = vmul.f32 %v1328, %v1333
        %v1335 = vmul.f32 %v1329, %v1333
        %v1336 = vlaneseq
        %v1337 = vshrl.u32 %v1336, 7
        %v1338 = vsub.s32 7, %v1337
        %v1339 = vrot.slane %v439, %v1338
        %v1340 = vadd.f32 %v1334, %v1339
        %v1341 = vadd.f32 %v1335, %v1339
        %v1342 = vpack.c.bf16 %v1341, %v1340
        %v1343 = vld [vmem:[%s385] sm:$0xf]
        %v1344 = vld [vmem:[%s385 + $0x4] sm:$0xf]
        %v1345 = vld [vmem:[%s385 + $0x8] sm:$0xf]
        %v1346 = vld [vmem:[%s385 + $0xc] sm:$0xf]
        %v1347 = vld [vmem:[%s385 + $0x10] sm:$0xf]
        %v1348 = vld [vmem:[%s385 + $0x14] sm:$0xf]
        %v1349 = vld [vmem:[%s385 + $0x18] sm:$0xf]
        %v1350 = vld [vmem:[%s385 + $0x1c] sm:$0xf]
        %v1351 = vld [vmem:[%s385 + $0x20] sm:$0xf]
        %v1352 = vld [vmem:[%s385 + $0x24] sm:$0xf]
        %v1353 = vld [vmem:[%s385 + $0x28] sm:$0xf]
        %v1354 = vld [vmem:[%s385 + $0x2c] sm:$0xf]
        %v1355 = vld [vmem:[%s385 + $0x30] sm:$0xf]
        %v1356 = vld [vmem:[%s385 + $0x34] sm:$0xf]
        %v1357 = vld [vmem:[%s385 + $0x38] sm:$0xf]
        %v1358 = vld [vmem:[%s385 + $0x3c] sm:$0xf]
        %v1359 = vlaneseq
        %v1360 = vshrl.u32 %v1359, 7
        %v1361 = vsub.s32 4, %v1360
        %v1362 = vrot.slane %v439, %v1361
        %v1379 = vunpack.c.l.b16 %v1343
        %v1380 = vunpack.c.l.b16 %v1344
        %v1381 = vunpack.c.l.b16 %v1345
        %v1382 = vunpack.c.l.b16 %v1346
        %v1383 = vunpack.c.l.b16 %v1347
        %v1384 = vunpack.c.l.b16 %v1348
        %v1385 = vunpack.c.l.b16 %v1349
        %v1386 = vunpack.c.l.b16 %v1350
        %v1387 = vunpack.c.l.b16 %v1351
        %v1388 = vunpack.c.l.b16 %v1352
        %v1389 = vunpack.c.l.b16 %v1353
        %v1390 = vunpack.c.l.b16 %v1354
        %v1391 = vunpack.c.l.b16 %v1355
        %v1392 = vunpack.c.l.b16 %v1356
        %v1393 = vunpack.c.l.b16 %v1357
        %v1394 = vunpack.c.l.b16 %v1358
        %v1395 = vpack.c.b16 %v1380, %v1379
        %v1396 = vpack.c.b16 %v1382, %v1381
        %v1397 = vpack.c.b16 %v1384, %v1383
        %v1398 = vpack.c.b16 %v1386, %v1385
        %v1399 = vpack.c.b16 %v1388, %v1387
        %v1400 = vpack.c.b16 %v1390, %v1389
        %v1401 = vpack.c.b16 %v1392, %v1391
        %v1402 = vpack.c.b16 %v1394, %v1393
        %1411 = vmatprep.subr.bf16.mxu0 0
        %1412 = vmatpush1.bf16.msra.mxu0 %v1402
        %1413 = vmatprep.subr.bf16.mxu0 0
        %1414 = vmatpush1.bf16.msra.mxu0 %v1401
        %1415 = vmatprep.subr.bf16.mxu0 0
        %1416 = vmatpush1.bf16.msra.mxu0 %v1400
        %1417 = vmatprep.subr.bf16.mxu0 0
        %1418 = vmatpush1.bf16.msra.mxu0 %v1399
        %1419 = vmatprep.subr.bf16.mxu0 0
        %1420 = vmatpush1.bf16.msra.mxu0 %v1398
        %1421 = vmatprep.subr.bf16.mxu0 0
        %1422 = vmatpush1.bf16.msra.mxu0 %v1397
        %1423 = vmatprep.subr.bf16.mxu0 0
        %1424 = vmatpush1.bf16.msra.mxu0 %v1396
        %1425 = vmatprep.subr.bf16.mxu0 0
        %1426 = vmatpush1.bf16.msra.mxu0 %v1395
        %1427 = vmatprep.subr.bf16.mxu0 0
        %1428 = vmatpush2.bf16.msra.mxu0 0
        %1429 = vmatprep.subr.bf16.mxu0 0
        %1430 = vmatpush2.bf16.msra.mxu0 0
        %1431 = vmatprep.subr.bf16.mxu0 0
        %1432 = vmatpush2.bf16.msra.mxu0 0
        %1433 = vmatprep.subr.bf16.mxu0 0
        %1434 = vmatpush2.bf16.msra.mxu0 0
        %1435 = vmatprep.subr.bf16.mxu0 0
        %1436 = vmatpush2.bf16.msra.mxu0 0
        %1437 = vmatprep.subr.bf16.mxu0 0
        %1438 = vmatpush2.bf16.msra.mxu0 0
        %1439 = vmatprep.subr.bf16.mxu0 0
        %1440 = vmatpush2.bf16.msra.mxu0 0
        %1441 = vmatprep.subr.bf16.mxu0 0
        %1442 = vmatpush2.bf16.msra.mxu0 0
        %1443 = vmatprep.mubr.bf16.mxu0 0
        %1444 = vmatmul.mubr.bf16.gmra.mxu0 %v1342
        %v1445 = vpop.f32.mrf.mxu0
        %v1446 = vadd.f32 %v1362, %v1445
        %v1447 = vpop.f32.mrf.mxu0
        %v1448 = vpop.f32.mrf.mxu0
        %v1449 = vadd.f32 %v1362, %v1448
        %v1450 = vpop.f32.mrf.mxu0
        %1451 = vdwg.mxu0
        %v1452 = vmul.f32 %v1446, 0.5
        %v1453 = vmul.f32 %v1449, 0.5
        %v1454 = vmul.f32 %v1446, 0.044715
        %v1455 = vmul.f32 %v1449, 0.044715
        %v1456 = vmul.f32 %v1454, %v1446
        %v1457 = vmul.f32 %v1455, %v1449
        %v1458 = vmul.f32 %v1456, %v1446
        %v1459 = vmul.f32 %v1457, %v1449
        %v1460 = vadd.f32 %v1446, %v1458
        %v1461 = vadd.f32 %v1449, %v1459
        %v1462 = vmul.f32 %v1460, 0.7978845
        %v1463 = vmul.f32 %v1461, 0.7978845
        %v1464 = vtanh.pop %v1462
        %v1465 = vtanh.pop %v1463
        %v1466 = vadd.f32 %v1464, 1.0
        %v1467 = vadd.f32 %v1465, 1.0
        %v1468 = vmul.f32 %v1452, %v1466
        %v1469 = vmul.f32 %v1453, %v1467
        %v1470 = vpack.c.bf16 %v1469, %v1468
        %v1471 = vld [vmem:[%s323] sm:$0xf]
        %v1472 = vld [vmem:[%s323 + $0x4] sm:$0xf]
        %v1473 = vld [vmem:[%s323 + $0x8] sm:$0xf]
        %v1474 = vld [vmem:[%s323 + $0xc] sm:$0xf]
        %v1475 = vld [vmem:[%s323 + $0x10] sm:$0xf]
        %v1476 = vld [vmem:[%s323 + $0x14] sm:$0xf]
        %v1477 = vld [vmem:[%s323 + $0x18] sm:$0xf]
        %v1478 = vld [vmem:[%s323 + $0x1c] sm:$0xf]
        %v1479 = vld [vmem:[%s323 + $0x20] sm:$0xf]
        %v1480 = vld [vmem:[%s323 + $0x24] sm:$0xf]
        %v1481 = vld [vmem:[%s323 + $0x28] sm:$0xf]
        %v1482 = vld [vmem:[%s323 + $0x2c] sm:$0xf]
        %v1483 = vld [vmem:[%s323 + $0x30] sm:$0xf]
        %v1484 = vld [vmem:[%s323 + $0x34] sm:$0xf]
        %v1485 = vld [vmem:[%s323 + $0x38] sm:$0xf]
        %v1486 = vld [vmem:[%s323 + $0x3c] sm:$0xf]
        %v1487 = vlaneseq
        %v1488 = vshrl.u32 %v1487, 7
        %v1489 = vsub.s32 5, %v1488
        %v1490 = vrot.slane %v439, %v1489
        %v1507 = vunpack.c.l.b16 %v1471
        %v1508 = vunpack.c.l.b16 %v1472
        %v1509 = vunpack.c.l.b16 %v1473
        %v1510 = vunpack.c.l.b16 %v1474
        %v1511 = vunpack.c.l.b16 %v1475
        %v1512 = vunpack.c.l.b16 %v1476
        %v1513 = vunpack.c.l.b16 %v1477
        %v1514 = vunpack.c.l.b16 %v1478
        %v1515 = vunpack.c.l.b16 %v1479
        %v1516 = vunpack.c.l.b16 %v1480
        %v1517 = vunpack.c.l.b16 %v1481
        %v1518 = vunpack.c.l.b16 %v1482
        %v1519 = vunpack.c.l.b16 %v1483
        %v1520 = vunpack.c.l.b16 %v1484
        %v1521 = vunpack.c.l.b16 %v1485
        %v1522 = vunpack.c.l.b16 %v1486
        %v1523 = vpack.c.b16 %v1508, %v1507
        %v1524 = vpack.c.b16 %v1510, %v1509
        %v1525 = vpack.c.b16 %v1512, %v1511
        %v1526 = vpack.c.b16 %v1514, %v1513
        %v1527 = vpack.c.b16 %v1516, %v1515
        %v1528 = vpack.c.b16 %v1518, %v1517
        %v1529 = vpack.c.b16 %v1520, %v1519
        %v1530 = vpack.c.b16 %v1522, %v1521
        %1539 = vmatprep.subr.bf16.mxu0 0
        %1540 = vmatpush1.bf16.msra.mxu0 %v1530
        %1541 = vmatprep.subr.bf16.mxu0 0
        %1542 = vmatpush1.bf16.msra.mxu0 %v1529
        %1543 = vmatprep.subr.bf16.mxu0 0
        %1544 = vmatpush1.bf16.msra.mxu0 %v1528
        %1545 = vmatprep.subr.bf16.mxu0 0
        %1546 = vmatpush1.bf16.msra.mxu0 %v1527
        %1547 = vmatprep.subr.bf16.mxu0 0
        %1548 = vmatpush1.bf16.msra.mxu0 %v1526
        %1549 = vmatprep.subr.bf16.mxu0 0
        %1550 = vmatpush1.bf16.msra.mxu0 %v1525
        %1551 = vmatprep.subr.bf16.mxu0 0
        %1552 = vmatpush1.bf16.msra.mxu0 %v1524
        %1553 = vmatprep.subr.bf16.mxu0 0
        %1554 = vmatpush1.bf16.msra.mxu0 %v1523
        %1555 = vmatprep.subr.bf16.mxu0 0
        %1556 = vmatpush2.bf16.msra.mxu0 0
        %1557 = vmatprep.subr.bf16.mxu0 0
        %1558 = vmatpush2.bf16.msra.mxu0 0
        %1559 = vmatprep.subr.bf16.mxu0 0
        %1560 = vmatpush2.bf16.msra.mxu0 0
        %1561 = vmatprep.subr.bf16.mxu0 0
        %1562 = vmatpush2.bf16.msra.mxu0 0
        %1563 = vmatprep.subr.bf16.mxu0 0
        %1564 = vmatpush2.bf16.msra.mxu0 0
        %1565 = vmatprep.subr.bf16.mxu0 0
        %1566 = vmatpush2.bf16.msra.mxu0 0
        %1567 = vmatprep.subr.bf16.mxu0 0
        %1568 = vmatpush2.bf16.msra.mxu0 0
        %1569 = vmatprep.subr.bf16.mxu0 0
        %1570 = vmatpush2.bf16.msra.mxu0 0
        %1571 = vmatprep.mubr.bf16.mxu0 0
        %1572 = vmatmul.mubr.bf16.gmra.mxu0 %v1470
        %v1573 = vpop.f32.mrf.mxu0
        %v1574 = vadd.f32 %v1490, %v1573
        %v1575 = vpop.f32.mrf.mxu0
        %v1576 = vpop.f32.mrf.mxu0
        %v1577 = vadd.f32 %v1490, %v1576
        %v1578 = vpop.f32.mrf.mxu0
        %1579 = vdwg.mxu0
        %v1580 = vadd.f32 %v1340, %v1574
        %v1581 = vadd.f32 %v1341, %v1577
        %1582 = vadd.xlane.f32.xlu0 %v1580
        %v1583 = vpop.xlane.xlu0 %1582
        %1584 = vadd.xlane.f32.xlu0 %v1581
        %v1585 = vpop.xlane.xlu0 %1584
        %v1586 = vmul.f32 %v1583, 0.015625
        %v1587 = vmul.f32 %v1585, 0.015625
        %v1588 = vmul.f32 %v1580, %v1580
        %v1589 = vmul.f32 %v1581, %v1581
        %1590 = vadd.xlane.f32.xlu0 %v1588
        %v1591 = vpop.xlane.xlu0 %1590
        %1592 = vadd.xlane.f32.xlu0 %v1589
        %v1593 = vpop.xlane.xlu0 %1592
        %v1594 = vmul.f32 %v1591, 0.015625
        %v1595 = vmul.f32 %v1593, 0.015625
        %v1596 = vmul.f32 %v1586, %v1586
        %v1597 = vmul.f32 %v1587, %v1587
        %v1598 = vsub.f32 %v1594, %v1596
        %v1599 = vsub.f32 %v1595, %v1597
        %v1600 = vadd.f32 %v1598, 1e-05
        %v1601 = vadd.f32 %v1599, 1e-05
        %v1602 = vrsqrt.pop %v1600
        %v1603 = vrsqrt.pop %v1601
        %v1604 = vsub.f32 %v1580, %v1586
        %v1605 = vsub.f32 %v1581, %v1587
        %v1606 = vmul.f32 %v1604, %v1602
        %v1607 = vmul.f32 %v1605, %v1603
        %v1608 = vlaneseq
        %v1609 = vshrl.u32 %v1608, 7
        %v1610 = vsub.s32 0, %v1609
        %v1611 = vrot.slane %v440, %v1610
        %v1612 = vmul.f32 %v1606, %v1611
        %v1613 = vmul.f32 %v1607, %v1611
        %v1614 = vlaneseq
        %v1615 = vshrl.u32 %v1614, 7
        %v1616 = vsub.s32 1, %v1615
        %v1617 = vrot.slane %v440, %v1616
        %v1618 = vadd.f32 %v1612, %v1617
        %v1619 = vadd.f32 %v1613, %v1617
        %1620 = vst [vmem:[%s8] sm:$0xff] %v1618
        %1621 = vst [vmem:[%s8 + $0x8] sm:$0xff] %v1619
        // Predicated region
        $region61: #{_forward_jit.1} parent=51 // pred_check
          %p1622 = pneg %p228
        $region62: #{_forward_jit.1} parent=51 // pred_check_branch
          %1624 = sbr.rel (%p1622) target = $region64
        $region63: #{_forward_jit.1} parent=51 // pred_region
          _
        $region64: #{_forward_jit.1} parent=51 // pred_fallthru
          _
        // Predicated region
        $region65: #{_forward_jit.1} parent=51 // pred_check
          %p1625 = pneg %p228
        $region66: #{_forward_jit.1} parent=51 // pred_check_branch
          %1627 = sbr.rel (%p1625) target = $region68
        $region67: #{_forward_jit.1} parent=51 // pred_region
          _
        $region68: #{_forward_jit.1} parent=51 // pred_fallthru
          _
      $region52: #{_forward_jit.1} parent=5 // pred_fallthru
        _
      %p1628 = scmp.le.s32.totalorder 2, %s17
      // Predicated region
      $region69: #{_forward_jit.1} parent=5 // pred_check
        %p1629 = pneg %p1628
      $region70: #{_forward_jit.1} parent=5 // pred_check_branch
        %1631 = sbr.rel (%p1629) target = $region72
      $region71: #{_forward_jit.1} parent=5 // pred_region
        %s1632 = ssub.s32 %s17, 2
      $region72: #{_forward_jit.1} parent=5 // pred_fallthru
        _
    $region6: #{_forward_jit.1} parent=1 // loop_footer
      %s21 = sadd.s32 1, %s17
    $region7: #{_forward_jit.1} parent=1 // loop_footer_branch
      %16 = sbr.rel target = $region3
    $region8: #{_forward_jit.1} parent=1 // loop_exit
      _
    %1633 = vsyncpa [#allocation3], 1
    %s1634 = scalar_lea.sflag [#allocation3], 1
    %1635 = vsyncpa %s1634, 1

</llo_original>
